<compile_context>
chip_gen: v5e
topology: v5e:2x2
jax: 0.10.0
libtpu: 0.0.40
codegen_flags: <defaults>
</compile_context>

<pallas_src>
import functools
import math

import jax
import jax.numpy as jnp
from jax.experimental import pallas as pl
from jax.experimental.pallas import tpu as pltpu


_VMEM_BUDGET_BYTES = 20 * 1024 * 1024   # live-set cap per grid step (v7x-safe)
_TARGET_BLOCK_ROWS = 4096               # amortizes ~0.35us/step, feeds the MXU


# ----------------------------- Pallas kernel ------------------------------- #
def conv_mlp_kernel(x_ref, edge_ref, w1_ref, b1_ref, w2_ref, b2_ref, o_ref, *, W):
    """One grid step: Bb whole images, channels-last, rows = flattened pixels.

    x_ref   : (M, Cin)       input pixels (M = Bb*H*W)
    edge_ref: (M, 4)         bf16 0/1 source-side edge masks
                             [dw=-1 col, dw=+1 col, dh=-1 row, dh=+1 row]
    w1_ref  : (9*Cin, Hid)   conv1 taps folded into the contraction dim (bf16)
    b1_ref  : (1, Hid)       f32
    w2_ref  : (Hid, 9*Cout)  conv2 in scatter form (bf16)
    b2_ref  : (1, Cout)      f32
    o_ref   : (M, Cout)
    """
    M = x_ref.shape[0]
    Cout = o_ref.shape[1]

    x = x_ref[...]
    e = edge_ref[...]
    col_l = e[:, 0:1]   # source of dw=-1 must not be the last column
    col_r = e[:, 1:2]   # source of dw=+1 must not be the first column
    row_u = e[:, 2:3]   # source of dh=-1 must not be the last row
    row_d = e[:, 3:4]   # source of dh=+1 must not be the first row

    # ---- conv1: gather form, all 9 taps folded into one K = 9*Cin matmul ----
    # Column shifts first (mask sources pre-roll so any wraparound lands on 0).
    x_l = pltpu.roll(x * col_l, 1, axis=0)           # source p-1
    x_r = pltpu.roll(x * col_r, M - 1, axis=0)       # source p+1
    x3 = jnp.concatenate([x_l, x, x_r], axis=-1)     # (M, 3*Cin), kw-major
    # Row shifts applied to the whole 3-tap column group at once.
    x3_u = pltpu.roll(x3 * row_u, W, axis=0)         # source p-W
    x3_d = pltpu.roll(x3 * row_d, M - W, axis=0)     # source p+W
    x9 = jnp.concatenate([x3_u, x3, x3_d], axis=-1)  # (M, 9*Cin), (kh,kw,c) order
    x9 = x9.astype(jnp.bfloat16)

    hid = jnp.dot(x9, w1_ref[...], preferred_element_type=jnp.float32)
    hid = hid + b1_ref[...]
    # TODO(synk): PyTorch nn.GELU defaults to exact erf; tanh approximation is
    # used here (the `act` argument of the module is configurable anyway).
    hid = jax.nn.gelu(hid, approximate=True).astype(jnp.bfloat16)

    # ---- conv2: scatter form -- one wide (N = 9*Cout) matmul, then nine ----
    # ---- narrow (M, Cout) roll/mask/adds instead of rolling the wide hid ----
    p = jnp.dot(hid, w2_ref[...], preferred_element_type=jnp.float32)  # (M, 9*Cout)

    col_l_f = col_l.astype(jnp.float32)
    col_r_f = col_r.astype(jnp.float32)
    row_u_f = row_u.astype(jnp.float32)
    row_d_f = row_d.astype(jnp.float32)
    m_ul = row_u_f * col_l_f
    m_ur = row_u_f * col_r_f
    m_dl = row_d_f * col_l_f
    m_dr = row_d_f * col_r_f

    def tap(k):
        return p[:, k * Cout:(k + 1) * Cout]

    acc = tap(4)                                      # centre tap (kh=1, kw=1)
    taps = (
        (0, -W - 1, m_ul),     # kh=0, kw=0
        (1, -W,     row_u_f),  # kh=0, kw=1
        (2, -W + 1, m_ur),     # kh=0, kw=2
        (3, -1,     col_l_f),  # kh=1, kw=0
        (5, 1,      col_r_f),  # kh=1, kw=2
        (6, W - 1,  m_dl),     # kh=2, kw=0
        (7, W,      row_d_f),  # kh=2, kw=1
        (8, W + 1,  m_dr),     # kh=2, kw=2
    )
    for k, off, m in taps:
        acc = acc + pltpu.roll(tap(k) * m, (-off) % M, axis=0)

    out = acc + b2_ref[...]
    # NOTE: output kept at its native (M, Cout) width: padding lanes to 128
    # would not reduce store-instruction count here and would 4x HBM writes.
    # TODO(synk): nn.Dropout(resid_pdrop) is a no-op at inference; training-mode
    # dropout (pltpu.prng_*) is intentionally not implemented.
    o_ref[...] = out.astype(o_ref.dtype)


# ------------------------------- wrapper ------------------------------------ #
def _bytes_per_row(Cin, Hid, Cout, in_bytes, out_bytes):
    """Rough VMEM live bytes per pixel row inside one grid step."""
    io = 2 * Cin * in_bytes + 2 * Cout * out_bytes          # double-buffered blocks
    edge = 2 * 128 * 2                                       # (M,4) bf16, lane-padded
    conv1 = (3 + 3 + 9) * Cin * in_bytes + 9 * Cin * 2      # x3/x9 staging + bf16 x9
    act = Hid * 4 + Hid * 2                                  # hid f32 + bf16 copy
    conv2 = 9 * Cout * 4 + 2 * Cout * 4                      # P f32 + rolled/acc
    return int(1.5 * (io + edge + conv1 + act + conv2))      # fudge for temporaries


def _pick_batch_block(B, N, bytes_per_row, max_block_rows=None):
    """Pick Bb (whole images per block) from an explicit VMEM budget, keeping
    >= 2 grid steps when the workload is big enough (megacore / double
    buffering) and one big block for tiny workloads."""
    budget_rows = max(N, _VMEM_BUDGET_BYTES // max(bytes_per_row, 1))
    target_rows = int(min(budget_rows, _TARGET_BLOCK_ROWS))
    if max_block_rows is not None:
        target_rows = min(target_rows, int(max_block_rows))
    if B * N <= target_rows:
        return B                  # tiny workload: one block beats several tiny ones
    # TODO(synk): row-band tiling with an H-row halo would allow splitting a
    # single huge image; blocks are whole images here.
    align = 8 // math.gcd(N, 8)   # keeps (Bb*N) % 8 == 0 when tiling
    want = max(1, target_rows // N)
    upper = min(want, B // 2 if B >= 2 * align else B)
    for bb in range(max(upper, 1), 0, -1):
        if B % bb == 0 and bb % align == 0:
            return bb
    return B


def conv_mlp(x, w1, b1, w2, b2, *, max_block_rows=None):
    """x: (B, N, C); w1: (3,3,C,hid) HWIO; b1: (hid,); w2: (3,3,hid,C); b2: (C,).

    PyTorch Conv2d weights (Cout, Cin, 3, 3) convert via w.permute(2, 3, 1, 0).
    """
    B, N, Cin = x.shape
    H = int(round(math.sqrt(N)))
    W = H
    assert H * W == N, "sequence length must be a perfect square"
    Hid = w1.shape[-1]
    Cout = w2.shape[-1]
    assert w1.shape == (3, 3, Cin, Hid) and w2.shape == (3, 3, Hid, Cout)

    in_bytes = x.dtype.itemsize
    Bb = _pick_batch_block(B, N, _bytes_per_row(Cin, Hid, Cout, in_bytes, in_bytes),
                           max_block_rows)
    assert B % Bb == 0
    n_blocks = B // Bb
    M = Bb * N

    # Channels-last pixel slab + host-side layout/dtype plumbing (free):
    # conv1 taps folded into the contraction dim, conv2 in scatter form,
    # weights cast to bf16 once; biases stay f32.
    xf = x.reshape(B * N, Cin)
    w1f = w1.reshape(9 * Cin, Hid).astype(jnp.bfloat16)
    w2f = (w2.reshape(9, Hid, Cout).transpose(1, 0, 2)
             .reshape(Hid, 9 * Cout).astype(jnp.bfloat16))
    b1f = b1.reshape(1, Hid).astype(jnp.float32)
    b2f = b2.reshape(1, Cout).astype(jnp.float32)

    # Per-row 0/1 edge masks (source side), hoisted out of the kernel's tap
    # loops; also avoids in-kernel integer div/mod for non-power-of-two H/W.
    ww = jnp.arange(N, dtype=jnp.int32) % W
    hh = jnp.arange(N, dtype=jnp.int32) // W
    edge = jnp.stack([ww <= W - 2, ww >= 1, hh <= H - 2, hh >= 1], axis=-1)
    edgef = jnp.tile(edge, (B, 1)).astype(jnp.bfloat16)      # (B*N, 4)

    kernel = functools.partial(conv_mlp_kernel, W=W)

    x_spec = pl.BlockSpec((M, Cin), lambda i: (i, 0))
    if n_blocks >= 3:
        # Deeper input pipelining once per-block compute shrank (bf16/folded K).
        x_spec = pl.BlockSpec((M, Cin), lambda i: (i, 0),
                              pipeline_mode=pl.Buffered(3))

    flops = 2 * 9 * B * N * (Cin * Hid + Hid * Cout)
    bytes_accessed = (B * N * Cin * in_bytes + B * N * Cout * in_bytes
                      + B * N * 4 * 2
                      + 2 * 9 * (Cin * Hid + Hid * Cout) + 4 * (Hid + Cout))

    out = pl.pallas_call(
        kernel,
        out_shape=jax.ShapeDtypeStruct((B * N, Cout), x.dtype),
        grid_spec=pltpu.PrefetchScalarGridSpec(
            num_scalar_prefetch=0,
            grid=(n_blocks,),
            in_specs=[
                x_spec,                                            # x block
                pl.BlockSpec((M, 4), lambda i: (i, 0)),            # edge masks
                pl.BlockSpec((9 * Cin, Hid), lambda i: (0, 0)),    # conv1 W (resident)
                pl.BlockSpec((1, Hid), lambda i: (0, 0)),          # conv1 b
                pl.BlockSpec((Hid, 9 * Cout), lambda i: (0, 0)),   # conv2 W (resident)
                pl.BlockSpec((1, Cout), lambda i: (0, 0)),         # conv2 b
            ],
            out_specs=pl.BlockSpec((M, Cout), lambda i: (i, 0)),
        ),
        compiler_params=pltpu.CompilerParams(
            dimension_semantics=("parallel",),
            vmem_limit_bytes=32 * 1024 * 1024),
        cost_estimate=pl.CostEstimate(
            flops=flops,
            transcendentals=B * N * Hid,
            bytes_accessed=bytes_accessed),
    )(xf, edgef, w1f, b1f, w2f, b2f)
    return out.reshape(B, N, Cout)


# --------------------------- pure-JAX reference ----------------------------- #
def conv_mlp_ref(x, w1, b1, w2, b2):
    """Precision-matched reference: bf16 conv operands, f32 accumulation."""
    B, N, C = x.shape
    H = int(round(math.sqrt(N)))
    dn = ("NHWC", "HWIO", "NHWC")
    xi = x.reshape(B, H, H, C).astype(jnp.bfloat16)
    h = jax.lax.conv_general_dilated(
        xi, w1.astype(jnp.bfloat16), (1, 1), "SAME", dimension_numbers=dn,
        preferred_element_type=jnp.float32) + b1
    h = jax.nn.gelu(h, approximate=True).astype(jnp.bfloat16)
    o = jax.lax.conv_general_dilated(
        h, w2.astype(jnp.bfloat16), (1, 1), "SAME", dimension_numbers=dn,
        preferred_element_type=jnp.float32) + b2
    return o.reshape(B, N, -1).astype(x.dtype)


# ---------------------------------- main ------------------------------------ #
def _make_case(key, B, H, n_embd, mlp_hidden_times):
    N = H * H
    Hid = mlp_hidden_times * n_embd
    kx, k1, k2, k3, k4 = jax.random.split(key, 5)
    x = jax.random.normal(kx, (B, N, n_embd), dtype=jnp.float32)
    lim1 = 1.0 / math.sqrt(n_embd * 9)
    w1 = jax.random.uniform(k1, (3, 3, n_embd, Hid), minval=-lim1, maxval=lim1,
                            dtype=jnp.float32)
    b1 = jax.random.uniform(k2, (Hid,), minval=-lim1, maxval=lim1,
                            dtype=jnp.float32)
    lim2 = 1.0 / math.sqrt(Hid * 9)
    w2 = jax.random.uniform(k3, (3, 3, Hid, n_embd), minval=-lim2, maxval=lim2,
                            dtype=jnp.float32)
    b2 = jax.random.uniform(k4, (n_embd,), minval=-lim2, maxval=lim2,
                            dtype=jnp.float32)
    return x, w1, b1, w2, b2


if __name__ == "__main__":
    key = jax.random.PRNGKey(0)
    ka, kb = jax.random.split(key)

    # Case 1: Conv_MLP(n_embd=32, mlp_hidden_times=4) on 8x8 images, B=2
    # (tiny workload -> one block holding both whole images).
    x, w1, b1, w2, b2 = _make_case(ka, B=2, H=8, n_embd=32, mlp_hidden_times=4)
    out = jax.block_until_ready(conv_mlp(x, w1, b1, w2, b2))
    ref = conv_mlp_ref(x, w1, b1, w2, b2)
    assert out.shape == x.shape
    err = float(jnp.max(jnp.abs(out - ref)))
    assert err < 2e-3, f"case1 mismatch vs reference: max abs err {err}"

    # Case 2: non-power-of-two H=6, B=4, forced 2-block grid (2 images/block)
    # to exercise multi-block tiling and cross-image wraparound inside a block.
    x, w1, b1, w2, b2 = _make_case(kb, B=4, H=6, n_embd=32, mlp_hidden_times=2)
    out = jax.block_until_ready(conv_mlp(x, w1, b1, w2, b2, max_block_rows=72))
    ref = conv_mlp_ref(x, w1, b1, w2, b2)
    assert out.shape == x.shape
    err = float(jnp.max(jnp.abs(out - ref)))
    assert err < 2e-3, f"case2 mismatch vs reference: max abs err {err}"

    print("KERNEL_OK")
</pallas_src>

<mosaic_0001>
module attributes {stable_mosaic.version = 11 : i64} {
  func.func @conv_mlp_kernel(%arg0: i32, %arg1: memref<128x32xf32, #tpu.memory_space<vmem>>, %arg2: memref<128x4xbf16, #tpu.memory_space<vmem>>, %arg3: memref<288x128xbf16, #tpu.memory_space<vmem>>, %arg4: memref<1x128xf32, #tpu.memory_space<vmem>>, %arg5: memref<128x288xbf16, #tpu.memory_space<vmem>>, %arg6: memref<1x32xf32, #tpu.memory_space<vmem>>, %arg7: memref<128x32xf32, #tpu.memory_space<vmem>>) attributes {dimension_semantics = [#tpu.dimension_semantics<parallel>], iteration_bounds = array<i64: 1>, scalar_prefetch = 0 : i64, scratch_operands = 0 : i64, tpu.core_type = #tpu.core_type<tc>, window_params = [{transform_indices = @transform_0, window_bounds = array<i64: 128, 32>}, {transform_indices = @transform_1, window_bounds = array<i64: 128, 4>}, {pipeline_mode = #tpu.pipeline_mode<synchronous>, transform_indices = @transform_2, window_bounds = array<i64: 288, 128>}, {pipeline_mode = #tpu.pipeline_mode<synchronous>, transform_indices = @transform_3, window_bounds = array<i64: 1, 128>}, {pipeline_mode = #tpu.pipeline_mode<synchronous>, transform_indices = @transform_4, window_bounds = array<i64: 128, 288>}, {pipeline_mode = #tpu.pipeline_mode<synchronous>, transform_indices = @transform_5, window_bounds = array<i64: 1, 32>}, {transform_indices = @transform_6, window_bounds = array<i64: 128, 32>}]} {
    %c0 = arith.constant 0 : index
    %c0_0 = arith.constant 0 : index
    %0 = vector.load %arg1[%c0, %c0_0] : memref<128x32xf32, #tpu.memory_space<vmem>>, vector<128x32xf32>
    %c0_1 = arith.constant 0 : index
    %c0_2 = arith.constant 0 : index
    %1 = vector.load %arg2[%c0_1, %c0_2] : memref<128x4xbf16, #tpu.memory_space<vmem>>, vector<128x4xbf16>
    %2 = vector.extract_strided_slice %1 {offsets = [0, 0], sizes = [128, 1], strides = [1, 1]} : vector<128x4xbf16> to vector<128x1xbf16>
    %3 = vector.extract_strided_slice %1 {offsets = [0, 1], sizes = [128, 1], strides = [1, 1]} : vector<128x4xbf16> to vector<128x1xbf16>
    %4 = vector.extract_strided_slice %1 {offsets = [0, 2], sizes = [128, 1], strides = [1, 1]} : vector<128x4xbf16> to vector<128x1xbf16>
    %5 = vector.extract_strided_slice %1 {offsets = [0, 3], sizes = [128, 1], strides = [1, 1]} : vector<128x4xbf16> to vector<128x1xbf16>
    %6 = arith.extf %2 : vector<128x1xbf16> to vector<128x1xf32>
    %7 = vector.broadcast %6 : vector<128x1xf32> to vector<128x32xf32>
    %8 = arith.mulf %0, %7 : vector<128x32xf32>
    %c1_i32 = arith.constant 1 : i32
    %9 = tpu.dynamic_rotate %8 by %c1_i32 dim 0 : vector<128x32xf32>, i32 -> vector<128x32xf32>
    %10 = arith.extf %3 : vector<128x1xbf16> to vector<128x1xf32>
    %11 = vector.broadcast %10 : vector<128x1xf32> to vector<128x32xf32>
    %12 = arith.mulf %0, %11 : vector<128x32xf32>
    %c127_i32 = arith.constant 127 : i32
    %13 = tpu.dynamic_rotate %12 by %c127_i32 dim 0 : vector<128x32xf32>, i32 -> vector<128x32xf32>
    %14 = tpu.concatenate %9, %0, %13 in 1 : vector<128x32xf32>, vector<128x32xf32>, vector<128x32xf32> -> vector<128x96xf32>
    %15 = arith.extf %4 : vector<128x1xbf16> to vector<128x1xf32>
    %16 = vector.broadcast %15 : vector<128x1xf32> to vector<128x96xf32>
    %17 = arith.mulf %14, %16 : vector<128x96xf32>
    %c8_i32 = arith.constant 8 : i32
    %18 = tpu.dynamic_rotate %17 by %c8_i32 dim 0 : vector<128x96xf32>, i32 -> vector<128x96xf32>
    %19 = arith.extf %5 : vector<128x1xbf16> to vector<128x1xf32>
    %20 = vector.broadcast %19 : vector<128x1xf32> to vector<128x96xf32>
    %21 = arith.mulf %14, %20 : vector<128x96xf32>
    %c120_i32 = arith.constant 120 : i32
    %22 = tpu.dynamic_rotate %21 by %c120_i32 dim 0 : vector<128x96xf32>, i32 -> vector<128x96xf32>
    %23 = tpu.concatenate %18, %14, %22 in 1 : vector<128x96xf32>, vector<128x96xf32>, vector<128x96xf32> -> vector<128x288xf32>
    %24 = arith.truncf %23 : vector<128x288xf32> to vector<128x288xbf16>
    %c0_3 = arith.constant 0 : index
    %c0_4 = arith.constant 0 : index
    %25 = vector.load %arg3[%c0_3, %c0_4] : memref<288x128xbf16, #tpu.memory_space<vmem>>, vector<288x128xbf16>
    %cst = arith.constant dense<0.000000e+00> : vector<128x128xf32>
    %26 = tpu.matmul %24, %25, %cst {dimension_numbers = #tpu.dot_dimension_numbers<[1], [0], [0], [1], [0, 0, 1, 1], [], []>} : vector<128x288xbf16>, vector<288x128xbf16>, vector<128x128xf32> -> vector<128x128xf32>
    %c0_5 = arith.constant 0 : index
    %c0_6 = arith.constant 0 : index
    %27 = vector.load %arg4[%c0_5, %c0_6] : memref<1x128xf32, #tpu.memory_space<vmem>>, vector<1x128xf32>
    %28 = vector.broadcast %27 : vector<1x128xf32> to vector<128x128xf32>
    %29 = arith.addf %26, %28 : vector<128x128xf32>
    %30 = arith.mulf %29, %29 : vector<128x128xf32>
    %31 = arith.mulf %29, %30 : vector<128x128xf32>
    %cst_7 = arith.constant 4.471500e-02 : f32
    %32 = vector.broadcast %cst_7 : f32 to vector<128x128xf32>
    %33 = arith.mulf %32, %31 : vector<128x128xf32>
    %34 = arith.addf %29, %33 : vector<128x128xf32>
    %cst_8 = arith.constant 0.797884583 : f32
    %35 = vector.broadcast %cst_8 : f32 to vector<128x128xf32>
    %36 = arith.mulf %35, %34 : vector<128x128xf32>
    %37 = math.tanh %36 : vector<128x128xf32>
    %cst_9 = arith.constant 1.000000e+00 : f32
    %38 = vector.broadcast %cst_9 : f32 to vector<128x128xf32>
    %39 = arith.addf %38, %37 : vector<128x128xf32>
    %cst_10 = arith.constant 5.000000e-01 : f32
    %40 = vector.broadcast %cst_10 : f32 to vector<128x128xf32>
    %41 = arith.mulf %40, %39 : vector<128x128xf32>
    %42 = arith.mulf %29, %41 : vector<128x128xf32>
    %43 = arith.truncf %42 : vector<128x128xf32> to vector<128x128xbf16>
    %c0_11 = arith.constant 0 : index
    %c0_12 = arith.constant 0 : index
    %44 = vector.load %arg5[%c0_11, %c0_12] : memref<128x288xbf16, #tpu.memory_space<vmem>>, vector<128x288xbf16>
    %cst_13 = arith.constant dense<0.000000e+00> : vector<128x288xf32>
    %45 = tpu.matmul %43, %44, %cst_13 {dimension_numbers = #tpu.dot_dimension_numbers<[1], [0], [0], [1], [0, 0, 1, 1], [], []>} : vector<128x128xbf16>, vector<128x288xbf16>, vector<128x288xf32> -> vector<128x288xf32>
    %46 = arith.extf %2 : vector<128x1xbf16> to vector<128x1xf32>
    %47 = arith.extf %3 : vector<128x1xbf16> to vector<128x1xf32>
    %48 = arith.extf %4 : vector<128x1xbf16> to vector<128x1xf32>
    %49 = arith.extf %5 : vector<128x1xbf16> to vector<128x1xf32>
    %50 = arith.mulf %48, %46 : vector<128x1xf32>
    %51 = arith.mulf %48, %47 : vector<128x1xf32>
    %52 = arith.mulf %49, %46 : vector<128x1xf32>
    %53 = arith.mulf %49, %47 : vector<128x1xf32>
    %54 = vector.extract_strided_slice %45 {offsets = [0, 128], sizes = [128, 32], strides = [1, 1]} : vector<128x288xf32> to vector<128x32xf32>
    %55 = vector.extract_strided_slice %45 {offsets = [0, 0], sizes = [128, 32], strides = [1, 1]} : vector<128x288xf32> to vector<128x32xf32>
    %56 = vector.broadcast %50 : vector<128x1xf32> to vector<128x32xf32>
    %57 = arith.mulf %55, %56 : vector<128x32xf32>
    %c9_i32 = arith.constant 9 : i32
    %58 = tpu.dynamic_rotate %57 by %c9_i32 dim 0 : vector<128x32xf32>, i32 -> vector<128x32xf32>
    %59 = arith.addf %54, %58 : vector<128x32xf32>
    %60 = vector.extract_strided_slice %45 {offsets = [0, 32], sizes = [128, 32], strides = [1, 1]} : vector<128x288xf32> to vector<128x32xf32>
    %61 = vector.broadcast %48 : vector<128x1xf32> to vector<128x32xf32>
    %62 = arith.mulf %60, %61 : vector<128x32xf32>
    %c8_i32_14 = arith.constant 8 : i32
    %63 = tpu.dynamic_rotate %62 by %c8_i32_14 dim 0 : vector<128x32xf32>, i32 -> vector<128x32xf32>
    %64 = arith.addf %59, %63 : vector<128x32xf32>
    %65 = vector.extract_strided_slice %45 {offsets = [0, 64], sizes = [128, 32], strides = [1, 1]} : vector<128x288xf32> to vector<128x32xf32>
    %66 = vector.broadcast %51 : vector<128x1xf32> to vector<128x32xf32>
    %67 = arith.mulf %65, %66 : vector<128x32xf32>
    %c7_i32 = arith.constant 7 : i32
    %68 = tpu.dynamic_rotate %67 by %c7_i32 dim 0 : vector<128x32xf32>, i32 -> vector<128x32xf32>
    %69 = arith.addf %64, %68 : vector<128x32xf32>
    %70 = vector.extract_strided_slice %45 {offsets = [0, 96], sizes = [128, 32], strides = [1, 1]} : vector<128x288xf32> to vector<128x32xf32>
    %71 = vector.broadcast %46 : vector<128x1xf32> to vector<128x32xf32>
    %72 = arith.mulf %70, %71 : vector<128x32xf32>
    %c1_i32_15 = arith.constant 1 : i32
    %73 = tpu.dynamic_rotate %72 by %c1_i32_15 dim 0 : vector<128x32xf32>, i32 -> vector<128x32xf32>
    %74 = arith.addf %69, %73 : vector<128x32xf32>
    %75 = vector.extract_strided_slice %45 {offsets = [0, 160], sizes = [128, 32], strides = [1, 1]} : vector<128x288xf32> to vector<128x32xf32>
    %76 = vector.broadcast %47 : vector<128x1xf32> to vector<128x32xf32>
    %77 = arith.mulf %75, %76 : vector<128x32xf32>
    %c127_i32_16 = arith.constant 127 : i32
    %78 = tpu.dynamic_rotate %77 by %c127_i32_16 dim 0 : vector<128x32xf32>, i32 -> vector<128x32xf32>
    %79 = arith.addf %74, %78 : vector<128x32xf32>
    %80 = vector.extract_strided_slice %45 {offsets = [0, 192], sizes = [128, 32], strides = [1, 1]} : vector<128x288xf32> to vector<128x32xf32>
    %81 = vector.broadcast %52 : vector<128x1xf32> to vector<128x32xf32>
    %82 = arith.mulf %80, %81 : vector<128x32xf32>
    %c121_i32 = arith.constant 121 : i32
    %83 = tpu.dynamic_rotate %82 by %c121_i32 dim 0 : vector<128x32xf32>, i32 -> vector<128x32xf32>
    %84 = arith.addf %79, %83 : vector<128x32xf32>
    %85 = vector.extract_strided_slice %45 {offsets = [0, 224], sizes = [128, 32], strides = [1, 1]} : vector<128x288xf32> to vector<128x32xf32>
    %86 = vector.broadcast %49 : vector<128x1xf32> to vector<128x32xf32>
    %87 = arith.mulf %85, %86 : vector<128x32xf32>
    %c120_i32_17 = arith.constant 120 : i32
    %88 = tpu.dynamic_rotate %87 by %c120_i32_17 dim 0 : vector<128x32xf32>, i32 -> vector<128x32xf32>
    %89 = arith.addf %84, %88 : vector<128x32xf32>
    %90 = vector.extract_strided_slice %45 {offsets = [0, 256], sizes = [128, 32], strides = [1, 1]} : vector<128x288xf32> to vector<128x32xf32>
    %91 = vector.broadcast %53 : vector<128x1xf32> to vector<128x32xf32>
    %92 = arith.mulf %90, %91 : vector<128x32xf32>
    %c119_i32 = arith.constant 119 : i32
    %93 = tpu.dynamic_rotate %92 by %c119_i32 dim 0 : vector<128x32xf32>, i32 -> vector<128x32xf32>
    %94 = arith.addf %89, %93 : vector<128x32xf32>
    %c0_18 = arith.constant 0 : index
    %c0_19 = arith.constant 0 : index
    %95 = vector.load %arg6[%c0_18, %c0_19] : memref<1x32xf32, #tpu.memory_space<vmem>>, vector<1x32xf32>
    %96 = vector.broadcast %95 : vector<1x32xf32> to vector<128x32xf32>
    %97 = arith.addf %94, %96 : vector<128x32xf32>
    %c0_20 = arith.constant 0 : index
    %c0_21 = arith.constant 0 : index
    %98 = vector.load %arg7[%c0_20, %c0_21] : memref<128x32xf32, #tpu.memory_space<vmem>>, vector<128x32xf32>
    tpu.vector_store %arg7[%c0_20, %c0_21], %97 {strides = array<i32>} : memref<128x32xf32, #tpu.memory_space<vmem>>, vector<128x32xf32>,
    return
  }
  func.func @transform_0(%arg0: i32) -> (i32, i32) {
    %c0_i32 = arith.constant 0 : i32
    %c0_i32_0 = arith.constant 0 : i32
    return %arg0, %c0_i32 : i32, i32
  }
  func.func @transform_1(%arg0: i32) -> (i32, i32) {
    %c0_i32 = arith.constant 0 : i32
    %c0_i32_0 = arith.constant 0 : i32
    return %arg0, %c0_i32 : i32, i32
  }
  func.func @transform_2(%arg0: i32) -> (i32, i32) {
    %c0_i32 = arith.constant 0 : i32
    %c0_i32_0 = arith.constant 0 : i32
    %c0_i32_1 = arith.constant 0 : i32
    return %c0_i32, %c0_i32_0 : i32, i32
  }
  func.func @transform_3(%arg0: i32) -> (i32, i32) {
    %c0_i32 = arith.constant 0 : i32
    %c0_i32_0 = arith.constant 0 : i32
    %c0_i32_1 = arith.constant 0 : i32
    return %c0_i32, %c0_i32_0 : i32, i32
  }
  func.func @transform_4(%arg0: i32) -> (i32, i32) {
    %c0_i32 = arith.constant 0 : i32
    %c0_i32_0 = arith.constant 0 : i32
    %c0_i32_1 = arith.constant 0 : i32
    return %c0_i32, %c0_i32_0 : i32, i32
  }
  func.func @transform_5(%arg0: i32) -> (i32, i32) {
    %c0_i32 = arith.constant 0 : i32
    %c0_i32_0 = arith.constant 0 : i32
    %c0_i32_1 = arith.constant 0 : i32
    return %c0_i32, %c0_i32_0 : i32, i32
  }
  func.func @transform_6(%arg0: i32) -> (i32, i32) {
    %c0_i32 = arith.constant 0 : i32
    %c0_i32_0 = arith.constant 0 : i32
    return %arg0, %c0_i32 : i32, i32
  }
}

</mosaic_0001>

<llo_original>
// kernel: tpu_custom_call.1
$region0: #{tpu_custom_call.1}
  #allocation0 [shape = 'u32[]', space=smem, size = 0x4, offset = 0x4, fixed_abs, tag = 'smem constant byte address 0x4 - core index']
  #allocation1 [shape = 'u32[72,128]{1,0:T(1,128)}', space=vmem, size = 0x9000, scoped, tag = 'internal scratch']
  %s0 = inlined_call_operand.vmem [shape: f32[128,32], index: 0, kind: input, shape index: {}]
  %s1 = inlined_call_operand.vmem [shape: bf16[128,4], index: 1, kind: input, shape index: {}]
  %s2 = inlined_call_operand.vmem [shape: bf16[288,128], index: 2, kind: input, shape index: {}]
  %s3 = inlined_call_operand.vmem [shape: f32[1,128], index: 3, kind: input, shape index: {}]
  %s4 = inlined_call_operand.vmem [shape: bf16[128,288], index: 4, kind: input, shape index: {}]
  %s5 = inlined_call_operand.vmem [shape: f32[1,32], index: 5, kind: input, shape index: {}]
  %s6 = inlined_call_operand.vmem [shape: f32[128,32], index: 6, kind: output, shape index: {}]
  %s7 = sld [smem:[#allocation0]]
  $region34: #{tpu_custom_call.1} parent=0
    _
  %s9 = ssub.s32 1, %s7
  %s10 = scalar_select 0, %s9, %s7
  // Predicated region
  $region2: #{tpu_custom_call.1} parent=0 // pred_check
    _
  $region3: #{tpu_custom_call.1} parent=0 // pred_check_branch
    %12 = sbr.rel (0) target = $region5
  $region4: #{tpu_custom_call.1} parent=0 // pred_region
    _
  $region5: #{tpu_custom_call.1} parent=0 // pred_fallthru
    _
  // Predicated region
  $region6: #{tpu_custom_call.1} parent=0 // pred_check
    _
  $region7: #{tpu_custom_call.1} parent=0 // pred_check_branch
    %14 = sbr.rel (0) target = $region9
  $region8: #{tpu_custom_call.1} parent=0 // pred_region
    _
  $region9: #{tpu_custom_call.1} parent=0 // pred_fallthru
    _
  // Predicated region
  $region10: #{tpu_custom_call.1} parent=0 // pred_check
    _
  $region11: #{tpu_custom_call.1} parent=0 // pred_check_branch
    %16 = sbr.rel (0) target = $region13
  $region12: #{tpu_custom_call.1} parent=0 // pred_region
    _
  $region13: #{tpu_custom_call.1} parent=0 // pred_fallthru
    _
  // Predicated region
  $region14: #{tpu_custom_call.1} parent=0 // pred_check
    _
  $region15: #{tpu_custom_call.1} parent=0 // pred_check_branch
    %18 = sbr.rel (0) target = $region17
  $region16: #{tpu_custom_call.1} parent=0 // pred_region
    _
  $region17: #{tpu_custom_call.1} parent=0 // pred_fallthru
    _
  // Predicated region
  $region18: #{tpu_custom_call.1} parent=0 // pred_check
    _
  $region19: #{tpu_custom_call.1} parent=0 // pred_check_branch
    %20 = sbr.rel (0) target = $region21
  $region20: #{tpu_custom_call.1} parent=0 // pred_region
    _
  $region21: #{tpu_custom_call.1} parent=0 // pred_fallthru
    _
  // Predicated region
  $region22: #{tpu_custom_call.1} parent=0 // pred_check
    _
  $region23: #{tpu_custom_call.1} parent=0 // pred_check_branch
    %22 = sbr.rel (0) target = $region25
  $region24: #{tpu_custom_call.1} parent=0 // pred_region
    _
  $region25: #{tpu_custom_call.1} parent=0 // pred_fallthru
    _
  %v24 = vld [vmem:[%s0] sm:$0xff]
  %v25 = vld [vmem:[%s0 + $0x8] sm:$0xff]
  %v26 = vld [vmem:[%s0 + $0x10] sm:$0xff]
  %v27 = vld [vmem:[%s0 + $0x18] sm:$0xff]
  %v28 = vld [vmem:[%s0 + $0x20] sm:$0xff]
  %v29 = vld [vmem:[%s0 + $0x28] sm:$0xff]
  %v30 = vld [vmem:[%s0 + $0x30] sm:$0xff]
  %v31 = vld [vmem:[%s0 + $0x38] sm:$0xff]
  %v32 = vld [vmem:[%s0 + $0x40] sm:$0xff]
  %v33 = vld [vmem:[%s0 + $0x48] sm:$0xff]
  %v34 = vld [vmem:[%s0 + $0x50] sm:$0xff]
  %v35 = vld [vmem:[%s0 + $0x58] sm:$0xff]
  %v36 = vld [vmem:[%s0 + $0x60] sm:$0xff]
  %v37 = vld [vmem:[%s0 + $0x68] sm:$0xff]
  %v38 = vld [vmem:[%s0 + $0x70] sm:$0xff]
  %v39 = vld [vmem:[%s0 + $0x78] sm:$0xff]
  %v40 = vld [vmem:[%s1] sm:$0xf]
  %v41 = vld [vmem:[%s1 + $0x4] sm:$0xf]
  %v42 = vld [vmem:[%s1 + $0x8] sm:$0xf]
  %v43 = vld [vmem:[%s1 + $0xc] sm:$0xf]
  %v44 = vld [vmem:[%s1 + $0x10] sm:$0xf]
  %v45 = vld [vmem:[%s1 + $0x14] sm:$0xf]
  %v46 = vld [vmem:[%s1 + $0x18] sm:$0xf]
  %v47 = vld [vmem:[%s1 + $0x1c] sm:$0xf]
  %v48 = vld [vmem:[%s1 + $0x20] sm:$0xf]
  %v49 = vld [vmem:[%s1 + $0x24] sm:$0xf]
  %v50 = vld [vmem:[%s1 + $0x28] sm:$0xf]
  %v51 = vld [vmem:[%s1 + $0x2c] sm:$0xf]
  %v52 = vld [vmem:[%s1 + $0x30] sm:$0xf]
  %v53 = vld [vmem:[%s1 + $0x34] sm:$0xf]
  %v54 = vld [vmem:[%s1 + $0x38] sm:$0xf]
  %v55 = vld [vmem:[%s1 + $0x3c] sm:$0xf]
  %v56 = vunpack.c.l.bf16 %v40
  %v57 = vunpack.c.l.bf16 %v41
  %v58 = vunpack.c.l.bf16 %v42
  %v59 = vunpack.c.l.bf16 %v43
  %v60 = vunpack.c.l.bf16 %v44
  %v61 = vunpack.c.l.bf16 %v45
  %v62 = vunpack.c.l.bf16 %v46
  %v63 = vunpack.c.l.bf16 %v47
  %v64 = vunpack.c.l.bf16 %v48
  %v65 = vunpack.c.l.bf16 %v49
  %v66 = vunpack.c.l.bf16 %v50
  %v67 = vunpack.c.l.bf16 %v51
  %v68 = vunpack.c.l.bf16 %v52
  %v69 = vunpack.c.l.bf16 %v53
  %v70 = vunpack.c.l.bf16 %v54
  %v71 = vunpack.c.l.bf16 %v55
  %73 = vset.pattern.permute.xlu0 0
  %74 = vperm.xlu0 %73, %v56
  %v75 = vpop.permute.xlu0 %74
  %78 = vset.pattern.permute.xlu0 0
  %79 = vperm.xlu0 %78, %v57
  %v80 = vpop.permute.xlu0 %79
  %83 = vset.pattern.permute.xlu0 0
  %84 = vperm.xlu0 %83, %v58
  %v85 = vpop.permute.xlu0 %84
  %88 = vset.pattern.permute.xlu0 0
  %89 = vperm.xlu0 %88, %v59
  %v90 = vpop.permute.xlu0 %89
  %93 = vset.pattern.permute.xlu0 0
  %94 = vperm.xlu0 %93, %v60
  %v95 = vpop.permute.xlu0 %94
  %98 = vset.pattern.permute.xlu0 0
  %99 = vperm.xlu0 %98, %v61
  %v100 = vpop.permute.xlu0 %99
  %103 = vset.pattern.permute.xlu0 0
  %104 = vperm.xlu0 %103, %v62
  %v105 = vpop.permute.xlu0 %104
  %108 = vset.pattern.permute.xlu0 0
  %109 = vperm.xlu0 %108, %v63
  %v110 = vpop.permute.xlu0 %109
  %113 = vset.pattern.permute.xlu0 0
  %114 = vperm.xlu0 %113, %v64
  %v115 = vpop.permute.xlu0 %114
  %118 = vset.pattern.permute.xlu0 0
  %119 = vperm.xlu0 %118, %v65
  %v120 = vpop.permute.xlu0 %119
  %123 = vset.pattern.permute.xlu0 0
  %124 = vperm.xlu0 %123, %v66
  %v125 = vpop.permute.xlu0 %124
  %128 = vset.pattern.permute.xlu0 0
  %129 = vperm.xlu0 %128, %v67
  %v130 = vpop.permute.xlu0 %129
  %133 = vset.pattern.permute.xlu0 0
  %134 = vperm.xlu0 %133, %v68
  %v135 = vpop.permute.xlu0 %134
  %138 = vset.pattern.permute.xlu0 0
  %139 = vperm.xlu0 %138, %v69
  %v140 = vpop.permute.xlu0 %139
  %143 = vset.pattern.permute.xlu0 0
  %144 = vperm.xlu0 %143, %v70
  %v145 = vpop.permute.xlu0 %144
  %148 = vset.pattern.permute.xlu0 0
  %149 = vperm.xlu0 %148, %v71
  %v150 = vpop.permute.xlu0 %149
  %v152 = vmul.f32 %v24, %v75
  %v153 = vmul.f32 %v25, %v80
  %v154 = vmul.f32 %v26, %v85
  %v155 = vmul.f32 %v27, %v90
  %v156 = vmul.f32 %v28, %v95
  %v157 = vmul.f32 %v29, %v100
  %v158 = vmul.f32 %v30, %v105
  %v159 = vmul.f32 %v31, %v110
  %v160 = vmul.f32 %v32, %v115
  %v161 = vmul.f32 %v33, %v120
  %v162 = vmul.f32 %v34, %v125
  %v163 = vmul.f32 %v35, %v130
  %v164 = vmul.f32 %v36, %v135
  %v165 = vmul.f32 %v37, %v140
  %v166 = vmul.f32 %v38, %v145
  %v167 = vmul.f32 %v39, %v150
  %v168 = vrot.slane %v152, 7
  %v169 = vrot.slane %v153, 7
  %v170 = vrot.slane %v154, 7
  %v171 = vrot.slane %v155, 7
  %v172 = vrot.slane %v156, 7
  %v173 = vrot.slane %v157, 7
  %v174 = vrot.slane %v158, 7
  %v175 = vrot.slane %v159, 7
  %v176 = vrot.slane %v160, 7
  %v177 = vrot.slane %v161, 7
  %v178 = vrot.slane %v162, 7
  %v179 = vrot.slane %v163, 7
  %v180 = vrot.slane %v164, 7
  %v181 = vrot.slane %v165, 7
  %v182 = vrot.slane %v166, 7
  %v183 = vrot.slane %v167, 7
  %v184 = vlaneseq
  %v185 = vshrl.u32 %v184, 7
  %vm186 = vcmp.lt.s32.totalorder %v185, 1
  %v187 = vsel %vm186, %v182, %v183
  %v188 = vsel %vm186, %v181, %v182
  %v189 = vsel %vm186, %v180, %v181
  %v190 = vsel %vm186, %v179, %v180
  %v191 = vsel %vm186, %v178, %v179
  %v192 = vsel %vm186, %v177, %v178
  %v193 = vsel %vm186, %v176, %v177
  %v194 = vsel %vm186, %v175, %v176
  %v195 = vsel %vm186, %v174, %v175
  %v196 = vsel %vm186, %v173, %v174
  %v197 = vsel %vm186, %v172, %v173
  %v198 = vsel %vm186, %v171, %v172
  %v199 = vsel %vm186, %v170, %v171
  %v200 = vsel %vm186, %v169, %v170
  %v201 = vsel %vm186, %v168, %v169
  %v202 = vsel %vm186, %v183, %v168
  %203 = vset.pattern.permute.xlu0 1
  %204 = vperm.xlu0 %203, %v56
  %v205 = vpop.permute.xlu0 %204
  %207 = vset.pattern.permute.xlu0 1
  %208 = vperm.xlu0 %207, %v57
  %v209 = vpop.permute.xlu0 %208
  %211 = vset.pattern.permute.xlu0 1
  %212 = vperm.xlu0 %211, %v58
  %v213 = vpop.permute.xlu0 %212
  %215 = vset.pattern.permute.xlu0 1
  %216 = vperm.xlu0 %215, %v59
  %v217 = vpop.permute.xlu0 %216
  %219 = vset.pattern.permute.xlu0 1
  %220 = vperm.xlu0 %219, %v60
  %v221 = vpop.permute.xlu0 %220
  %223 = vset.pattern.permute.xlu0 1
  %224 = vperm.xlu0 %223, %v61
  %v225 = vpop.permute.xlu0 %224
  %227 = vset.pattern.permute.xlu0 1
  %228 = vperm.xlu0 %227, %v62
  %v229 = vpop.permute.xlu0 %228
  %231 = vset.pattern.permute.xlu0 1
  %232 = vperm.xlu0 %231, %v63
  %v233 = vpop.permute.xlu0 %232
  %235 = vset.pattern.permute.xlu0 1
  %236 = vperm.xlu0 %235, %v64
  %v237 = vpop.permute.xlu0 %236
  %239 = vset.pattern.permute.xlu0 1
  %240 = vperm.xlu0 %239, %v65
  %v241 = vpop.permute.xlu0 %240
  %243 = vset.pattern.permute.xlu0 1
  %244 = vperm.xlu0 %243, %v66
  %v245 = vpop.permute.xlu0 %244
  %247 = vset.pattern.permute.xlu0 1
  %248 = vperm.xlu0 %247, %v67
  %v249 = vpop.permute.xlu0 %248
  %251 = vset.pattern.permute.xlu0 1
  %252 = vperm.xlu0 %251, %v68
  %v253 = vpop.permute.xlu0 %252
  %255 = vset.pattern.permute.xlu0 1
  %256 = vperm.xlu0 %255, %v69
  %v257 = vpop.permute.xlu0 %256
  %259 = vset.pattern.permute.xlu0 1
  %260 = vperm.xlu0 %259, %v70
  %v261 = vpop.permute.xlu0 %260
  %263 = vset.pattern.permute.xlu0 1
  %264 = vperm.xlu0 %263, %v71
  %v265 = vpop.permute.xlu0 %264
  %v267 = vmul.f32 %v24, %v205
  %v268 = vmul.f32 %v25, %v209
  %v269 = vmul.f32 %v26, %v213
  %v270 = vmul.f32 %v27, %v217
  %v271 = vmul.f32 %v28, %v221
  %v272 = vmul.f32 %v29, %v225
  %v273 = vmul.f32 %v30, %v229
  %v274 = vmul.f32 %v31, %v233
  %v275 = vmul.f32 %v32, %v237
  %v276 = vmul.f32 %v33, %v241
  %v277 = vmul.f32 %v34, %v245
  %v278 = vmul.f32 %v35, %v249
  %v279 = vmul.f32 %v36, %v253
  %v280 = vmul.f32 %v37, %v257
  %v281 = vmul.f32 %v38, %v261
  %v282 = vmul.f32 %v39, %v265
  %v283 = vrot.slane %v267, 1
  %v284 = vrot.slane %v268, 1
  %v285 = vrot.slane %v269, 1
  %v286 = vrot.slane %v270, 1
  %v287 = vrot.slane %v271, 1
  %v288 = vrot.slane %v272, 1
  %v289 = vrot.slane %v273, 1
  %v290 = vrot.slane %v274, 1
  %v291 = vrot.slane %v275, 1
  %v292 = vrot.slane %v276, 1
  %v293 = vrot.slane %v277, 1
  %v294 = vrot.slane %v278, 1
  %v295 = vrot.slane %v279, 1
  %v296 = vrot.slane %v280, 1
  %v297 = vrot.slane %v281, 1
  %v298 = vrot.slane %v282, 1
  %vm299 = vcmp.lt.s32.totalorder %v185, 7
  %v300 = vsel %vm299, %v297, %v298
  %v301 = vsel %vm299, %v296, %v297
  %v302 = vsel %vm299, %v295, %v296
  %v303 = vsel %vm299, %v294, %v295
  %v304 = vsel %vm299, %v293, %v294
  %v305 = vsel %vm299, %v292, %v293
  %v306 = vsel %vm299, %v291, %v292
  %v307 = vsel %vm299, %v290, %v291
  %v308 = vsel %vm299, %v289, %v290
  %v309 = vsel %vm299, %v288, %v289
  %v310 = vsel %vm299, %v287, %v288
  %v311 = vsel %vm299, %v286, %v287
  %v312 = vsel %vm299, %v285, %v286
  %v313 = vsel %vm299, %v284, %v285
  %v314 = vsel %vm299, %v283, %v284
  %v315 = vsel %vm299, %v298, %v283
  %332 = vrot.lane.b32.xlu0 %v24, 32
  %v333 = vpop.permute.xlu0 %332
  %334 = vrot.lane.b32.xlu0 %v25, 32
  %v335 = vpop.permute.xlu0 %334
  %336 = vrot.lane.b32.xlu0 %v26, 32
  %v337 = vpop.permute.xlu0 %336
  %338 = vrot.lane.b32.xlu0 %v27, 32
  %v339 = vpop.permute.xlu0 %338
  %340 = vrot.lane.b32.xlu0 %v28, 32
  %v341 = vpop.permute.xlu0 %340
  %342 = vrot.lane.b32.xlu0 %v29, 32
  %v343 = vpop.permute.xlu0 %342
  %344 = vrot.lane.b32.xlu0 %v30, 32
  %v345 = vpop.permute.xlu0 %344
  %346 = vrot.lane.b32.xlu0 %v31, 32
  %v347 = vpop.permute.xlu0 %346
  %348 = vrot.lane.b32.xlu0 %v32, 32
  %v349 = vpop.permute.xlu0 %348
  %350 = vrot.lane.b32.xlu0 %v33, 32
  %v351 = vpop.permute.xlu0 %350
  %352 = vrot.lane.b32.xlu0 %v34, 32
  %v353 = vpop.permute.xlu0 %352
  %354 = vrot.lane.b32.xlu0 %v35, 32
  %v355 = vpop.permute.xlu0 %354
  %356 = vrot.lane.b32.xlu0 %v36, 32
  %v357 = vpop.permute.xlu0 %356
  %358 = vrot.lane.b32.xlu0 %v37, 32
  %v359 = vpop.permute.xlu0 %358
  %360 = vrot.lane.b32.xlu0 %v38, 32
  %v361 = vpop.permute.xlu0 %360
  %362 = vrot.lane.b32.xlu0 %v39, 32
  %v363 = vpop.permute.xlu0 %362
  %396 = vrot.lane.b32.xlu0 %v314, 64
  %v397 = vpop.permute.xlu0 %396
  %398 = vrot.lane.b32.xlu0 %v313, 64
  %v399 = vpop.permute.xlu0 %398
  %400 = vrot.lane.b32.xlu0 %v312, 64
  %v401 = vpop.permute.xlu0 %400
  %402 = vrot.lane.b32.xlu0 %v311, 64
  %v403 = vpop.permute.xlu0 %402
  %404 = vrot.lane.b32.xlu0 %v310, 64
  %v405 = vpop.permute.xlu0 %404
  %406 = vrot.lane.b32.xlu0 %v309, 64
  %v407 = vpop.permute.xlu0 %406
  %408 = vrot.lane.b32.xlu0 %v308, 64
  %v409 = vpop.permute.xlu0 %408
  %410 = vrot.lane.b32.xlu0 %v307, 64
  %v411 = vpop.permute.xlu0 %410
  %412 = vrot.lane.b32.xlu0 %v306, 64
  %v413 = vpop.permute.xlu0 %412
  %414 = vrot.lane.b32.xlu0 %v305, 64
  %v415 = vpop.permute.xlu0 %414
  %416 = vrot.lane.b32.xlu0 %v304, 64
  %v417 = vpop.permute.xlu0 %416
  %418 = vrot.lane.b32.xlu0 %v303, 64
  %v419 = vpop.permute.xlu0 %418
  %420 = vrot.lane.b32.xlu0 %v302, 64
  %v421 = vpop.permute.xlu0 %420
  %422 = vrot.lane.b32.xlu0 %v301, 64
  %v423 = vpop.permute.xlu0 %422
  %424 = vrot.lane.b32.xlu0 %v300, 64
  %v425 = vpop.permute.xlu0 %424
  %426 = vrot.lane.b32.xlu0 %v315, 64
  %v427 = vpop.permute.xlu0 %426
  %vm444 = vcmask 261120
  %v445 = vsel %vm444, %v202, %v333
  %v446 = vsel %vm444, %v201, %v335
  %v447 = vsel %vm444, %v200, %v337
  %v448 = vsel %vm444, %v199, %v339
  %v449 = vsel %vm444, %v198, %v341
  %v450 = vsel %vm444, %v197, %v343
  %v451 = vsel %vm444, %v196, %v345
  %v452 = vsel %vm444, %v195, %v347
  %v453 = vsel %vm444, %v194, %v349
  %v454 = vsel %vm444, %v193, %v351
  %v455 = vsel %vm444, %v192, %v353
  %v456 = vsel %vm444, %v191, %v355
  %v457 = vsel %vm444, %v190, %v357
  %v458 = vsel %vm444, %v189, %v359
  %v459 = vsel %vm444, %v188, %v361
  %v460 = vsel %vm444, %v187, %v363
  %vm461 = vcmask 523264
  %v462 = vsel %vm461, %v445, %v397
  %v463 = vsel %vm461, %v446, %v399
  %v464 = vsel %vm461, %v447, %v401
  %v465 = vsel %vm461, %v448, %v403
  %v466 = vsel %vm461, %v449, %v405
  %v467 = vsel %vm461, %v450, %v407
  %v468 = vsel %vm461, %v451, %v409
  %v469 = vsel %vm461, %v452, %v411
  %v470 = vsel %vm461, %v453, %v413
  %v471 = vsel %vm461, %v454, %v415
  %v472 = vsel %vm461, %v455, %v417
  %v473 = vsel %vm461, %v456, %v419
  %v474 = vsel %vm461, %v457, %v421
  %v475 = vsel %vm461, %v458, %v423
  %v476 = vsel %vm461, %v459, %v425
  %v477 = vsel %vm461, %v460, %v427
  %478 = vset.pattern.permute.xlu0 2
  %479 = vperm.xlu0 %478, %v56
  %v480 = vpop.permute.xlu0 %479
  %482 = vset.pattern.permute.xlu0 2
  %483 = vperm.xlu0 %482, %v57
  %v484 = vpop.permute.xlu0 %483
  %486 = vset.pattern.permute.xlu0 2
  %487 = vperm.xlu0 %486, %v58
  %v488 = vpop.permute.xlu0 %487
  %490 = vset.pattern.permute.xlu0 2
  %491 = vperm.xlu0 %490, %v59
  %v492 = vpop.permute.xlu0 %491
  %494 = vset.pattern.permute.xlu0 2
  %495 = vperm.xlu0 %494, %v60
  %v496 = vpop.permute.xlu0 %495
  %498 = vset.pattern.permute.xlu0 2
  %499 = vperm.xlu0 %498, %v61
  %v500 = vpop.permute.xlu0 %499
  %502 = vset.pattern.permute.xlu0 2
  %503 = vperm.xlu0 %502, %v62
  %v504 = vpop.permute.xlu0 %503
  %506 = vset.pattern.permute.xlu0 2
  %507 = vperm.xlu0 %506, %v63
  %v508 = vpop.permute.xlu0 %507
  %510 = vset.pattern.permute.xlu0 2
  %511 = vperm.xlu0 %510, %v64
  %v512 = vpop.permute.xlu0 %511
  %514 = vset.pattern.permute.xlu0 2
  %515 = vperm.xlu0 %514, %v65
  %v516 = vpop.permute.xlu0 %515
  %518 = vset.pattern.permute.xlu0 2
  %519 = vperm.xlu0 %518, %v66
  %v520 = vpop.permute.xlu0 %519
  %522 = vset.pattern.permute.xlu0 2
  %523 = vperm.xlu0 %522, %v67
  %v524 = vpop.permute.xlu0 %523
  %526 = vset.pattern.permute.xlu0 2
  %527 = vperm.xlu0 %526, %v68
  %v528 = vpop.permute.xlu0 %527
  %530 = vset.pattern.permute.xlu0 2
  %531 = vperm.xlu0 %530, %v69
  %v532 = vpop.permute.xlu0 %531
  %534 = vset.pattern.permute.xlu0 2
  %535 = vperm.xlu0 %534, %v70
  %v536 = vpop.permute.xlu0 %535
  %538 = vset.pattern.permute.xlu0 2
  %539 = vperm.xlu0 %538, %v71
  %v540 = vpop.permute.xlu0 %539
  %v542 = vmul.f32 %v462, %v480
  %v543 = vmul.f32 %v463, %v484
  %v544 = vmul.f32 %v464, %v488
  %v545 = vmul.f32 %v465, %v492
  %v546 = vmul.f32 %v466, %v496
  %v547 = vmul.f32 %v467, %v500
  %v548 = vmul.f32 %v468, %v504
  %v549 = vmul.f32 %v469, %v508
  %v550 = vmul.f32 %v470, %v512
  %v551 = vmul.f32 %v471, %v516
  %v552 = vmul.f32 %v472, %v520
  %v553 = vmul.f32 %v473, %v524
  %v554 = vmul.f32 %v474, %v528
  %v555 = vmul.f32 %v475, %v532
  %v556 = vmul.f32 %v476, %v536
  %v557 = vmul.f32 %v477, %v540
  %558 = vset.pattern.permute.xlu0 3
  %559 = vperm.xlu0 %558, %v56
  %v560 = vpop.permute.xlu0 %559
  %562 = vset.pattern.permute.xlu0 3
  %563 = vperm.xlu0 %562, %v57
  %v564 = vpop.permute.xlu0 %563
  %566 = vset.pattern.permute.xlu0 3
  %567 = vperm.xlu0 %566, %v58
  %v568 = vpop.permute.xlu0 %567
  %570 = vset.pattern.permute.xlu0 3
  %571 = vperm.xlu0 %570, %v59
  %v572 = vpop.permute.xlu0 %571
  %574 = vset.pattern.permute.xlu0 3
  %575 = vperm.xlu0 %574, %v60
  %v576 = vpop.permute.xlu0 %575
  %578 = vset.pattern.permute.xlu0 3
  %579 = vperm.xlu0 %578, %v61
  %v580 = vpop.permute.xlu0 %579
  %582 = vset.pattern.permute.xlu0 3
  %583 = vperm.xlu0 %582, %v62
  %v584 = vpop.permute.xlu0 %583
  %586 = vset.pattern.permute.xlu0 3
  %587 = vperm.xlu0 %586, %v63
  %v588 = vpop.permute.xlu0 %587
  %590 = vset.pattern.permute.xlu0 3
  %591 = vperm.xlu0 %590, %v64
  %v592 = vpop.permute.xlu0 %591
  %594 = vset.pattern.permute.xlu0 3
  %595 = vperm.xlu0 %594, %v65
  %v596 = vpop.permute.xlu0 %595
  %598 = vset.pattern.permute.xlu0 3
  %599 = vperm.xlu0 %598, %v66
  %v600 = vpop.permute.xlu0 %599
  %602 = vset.pattern.permute.xlu0 3
  %603 = vperm.xlu0 %602, %v67
  %v604 = vpop.permute.xlu0 %603
  %606 = vset.pattern.permute.xlu0 3
  %607 = vperm.xlu0 %606, %v68
  %v608 = vpop.permute.xlu0 %607
  %610 = vset.pattern.permute.xlu0 3
  %611 = vperm.xlu0 %610, %v69
  %v612 = vpop.permute.xlu0 %611
  %614 = vset.pattern.permute.xlu0 3
  %615 = vperm.xlu0 %614, %v70
  %v616 = vpop.permute.xlu0 %615
  %618 = vset.pattern.permute.xlu0 3
  %619 = vperm.xlu0 %618, %v71
  %v620 = vpop.permute.xlu0 %619
  %v622 = vmul.f32 %v462, %v560
  %v623 = vmul.f32 %v463, %v564
  %v624 = vmul.f32 %v464, %v568
  %v625 = vmul.f32 %v465, %v572
  %v626 = vmul.f32 %v466, %v576
  %v627 = vmul.f32 %v467, %v580
  %v628 = vmul.f32 %v468, %v584
  %v629 = vmul.f32 %v469, %v588
  %v630 = vmul.f32 %v470, %v592
  %v631 = vmul.f32 %v471, %v596
  %v632 = vmul.f32 %v472, %v600
  %v633 = vmul.f32 %v473, %v604
  %v634 = vmul.f32 %v474, %v608
  %v635 = vmul.f32 %v475, %v612
  %v636 = vmul.f32 %v476, %v616
  %v637 = vmul.f32 %v477, %v620
  %654 = vrot.lane.b32.xlu0 %v462, 96
  %v655 = vpop.permute.xlu0 %654
  %656 = vrot.lane.b32.xlu0 %v463, 96
  %v657 = vpop.permute.xlu0 %656
  %658 = vrot.lane.b32.xlu0 %v464, 96
  %v659 = vpop.permute.xlu0 %658
  %660 = vrot.lane.b32.xlu0 %v465, 96
  %v661 = vpop.permute.xlu0 %660
  %662 = vrot.lane.b32.xlu0 %v466, 96
  %v663 = vpop.permute.xlu0 %662
  %664 = vrot.lane.b32.xlu0 %v467, 96
  %v665 = vpop.permute.xlu0 %664
  %666 = vrot.lane.b32.xlu0 %v468, 96
  %v667 = vpop.permute.xlu0 %666
  %668 = vrot.lane.b32.xlu0 %v469, 96
  %v669 = vpop.permute.xlu0 %668
  %670 = vrot.lane.b32.xlu0 %v470, 96
  %v671 = vpop.permute.xlu0 %670
  %672 = vrot.lane.b32.xlu0 %v471, 96
  %v673 = vpop.permute.xlu0 %672
  %674 = vrot.lane.b32.xlu0 %v472, 96
  %v675 = vpop.permute.xlu0 %674
  %676 = vrot.lane.b32.xlu0 %v473, 96
  %v677 = vpop.permute.xlu0 %676
  %678 = vrot.lane.b32.xlu0 %v474, 96
  %v679 = vpop.permute.xlu0 %678
  %680 = vrot.lane.b32.xlu0 %v475, 96
  %v681 = vpop.permute.xlu0 %680
  %682 = vrot.lane.b32.xlu0 %v476, 96
  %v683 = vpop.permute.xlu0 %682
  %684 = vrot.lane.b32.xlu0 %v477, 96
  %v685 = vpop.permute.xlu0 %684
  %718 = vrot.lane.b32.xlu0 %v623, 64
  %v719 = vpop.permute.xlu0 %718
  %720 = vrot.lane.b32.xlu0 %v624, 64
  %v721 = vpop.permute.xlu0 %720
  %722 = vrot.lane.b32.xlu0 %v625, 64
  %v723 = vpop.permute.xlu0 %722
  %724 = vrot.lane.b32.xlu0 %v626, 64
  %v725 = vpop.permute.xlu0 %724
  %726 = vrot.lane.b32.xlu0 %v627, 64
  %v727 = vpop.permute.xlu0 %726
  %728 = vrot.lane.b32.xlu0 %v628, 64
  %v729 = vpop.permute.xlu0 %728
  %730 = vrot.lane.b32.xlu0 %v629, 64
  %v731 = vpop.permute.xlu0 %730
  %732 = vrot.lane.b32.xlu0 %v630, 64
  %v733 = vpop.permute.xlu0 %732
  %734 = vrot.lane.b32.xlu0 %v631, 64
  %v735 = vpop.permute.xlu0 %734
  %736 = vrot.lane.b32.xlu0 %v632, 64
  %v737 = vpop.permute.xlu0 %736
  %738 = vrot.lane.b32.xlu0 %v633, 64
  %v739 = vpop.permute.xlu0 %738
  %740 = vrot.lane.b32.xlu0 %v634, 64
  %v741 = vpop.permute.xlu0 %740
  %742 = vrot.lane.b32.xlu0 %v635, 64
  %v743 = vpop.permute.xlu0 %742
  %744 = vrot.lane.b32.xlu0 %v636, 64
  %v745 = vpop.permute.xlu0 %744
  %746 = vrot.lane.b32.xlu0 %v637, 64
  %v747 = vpop.permute.xlu0 %746
  %748 = vrot.lane.b32.xlu0 %v622, 64
  %v749 = vpop.permute.xlu0 %748
  %vm766 = vcmask 785408
  %v767 = vsel %vm766, %v557, %v655
  %v768 = vsel %vm766, %v542, %v657
  %v769 = vsel %vm766, %v543, %v659
  %v770 = vsel %vm766, %v544, %v661
  %v771 = vsel %vm766, %v545, %v663
  %v772 = vsel %vm766, %v546, %v665
  %v773 = vsel %vm766, %v547, %v667
  %v774 = vsel %vm766, %v548, %v669
  %v775 = vsel %vm766, %v549, %v671
  %v776 = vsel %vm766, %v550, %v673
  %v777 = vsel %vm766, %v551, %v675
  %v778 = vsel %vm766, %v552, %v677
  %v779 = vsel %vm766, %v553, %v679
  %v780 = vsel %vm766, %v554, %v681
  %v781 = vsel %vm766, %v555, %v683
  %v782 = vsel %vm766, %v556, %v685
  %v783 = vsel %vm461, %v655, %v719
  %v784 = vsel %vm461, %v657, %v721
  %v785 = vsel %vm461, %v659, %v723
  %v786 = vsel %vm461, %v661, %v725
  %v787 = vsel %vm461, %v663, %v727
  %v788 = vsel %vm461, %v665, %v729
  %v789 = vsel %vm461, %v667, %v731
  %v790 = vsel %vm461, %v669, %v733
  %v791 = vsel %vm461, %v671, %v735
  %v792 = vsel %vm461, %v673, %v737
  %v793 = vsel %vm461, %v675, %v739
  %v794 = vsel %vm461, %v677, %v741
  %v795 = vsel %vm461, %v679, %v743
  %v796 = vsel %vm461, %v681, %v745
  %v797 = vsel %vm461, %v683, %v747
  %v798 = vsel %vm461, %v685, %v749
  %v799 = vpack.c.bf16 %v768, %v767
  %v800 = vpack.c.bf16 %v784, %v783
  %v801 = vpack.c.bf16 %v721, %v719
  %v802 = vpack.c.bf16 %v770, %v769
  %v803 = vpack.c.bf16 %v786, %v785
  %v804 = vpack.c.bf16 %v725, %v723
  %v805 = vpack.c.bf16 %v772, %v771
  %v806 = vpack.c.bf16 %v788, %v787
  %v807 = vpack.c.bf16 %v729, %v727
  %v808 = vpack.c.bf16 %v774, %v773
  %v809 = vpack.c.bf16 %v790, %v789
  %v810 = vpack.c.bf16 %v733, %v731
  %v811 = vpack.c.bf16 %v776, %v775
  %v812 = vpack.c.bf16 %v792, %v791
  %v813 = vpack.c.bf16 %v737, %v735
  %v814 = vpack.c.bf16 %v778, %v777
  %v815 = vpack.c.bf16 %v794, %v793
  %v816 = vpack.c.bf16 %v741, %v739
  %v817 = vpack.c.bf16 %v780, %v779
  %v818 = vpack.c.bf16 %v796, %v795
  %v819 = vpack.c.bf16 %v745, %v743
  %v820 = vpack.c.bf16 %v782, %v781
  %v821 = vpack.c.bf16 %v798, %v797
  %v822 = vpack.c.bf16 %v749, %v747
  %v823 = vld [vmem:[%s2] sm:$0xf]
  %v824 = vld [vmem:[%s2 + $0x4] sm:$0xf]
  %v825 = vld [vmem:[%s2 + $0x8] sm:$0xf]
  %v826 = vld [vmem:[%s2 + $0xc] sm:$0xf]
  %v827 = vld [vmem:[%s2 + $0x10] sm:$0xf]
  %v828 = vld [vmem:[%s2 + $0x14] sm:$0xf]
  %v829 = vld [vmem:[%s2 + $0x18] sm:$0xf]
  %v830 = vld [vmem:[%s2 + $0x1c] sm:$0xf]
  %v831 = vld [vmem:[%s2 + $0x20] sm:$0xf]
  %v832 = vld [vmem:[%s2 + $0x24] sm:$0xf]
  %v833 = vld [vmem:[%s2 + $0x28] sm:$0xf]
  %v834 = vld [vmem:[%s2 + $0x2c] sm:$0xf]
  %v835 = vld [vmem:[%s2 + $0x30] sm:$0xf]
  %v836 = vld [vmem:[%s2 + $0x34] sm:$0xf]
  %v837 = vld [vmem:[%s2 + $0x38] sm:$0xf]
  %v838 = vld [vmem:[%s2 + $0x3c] sm:$0xf]
  %v839 = vld [vmem:[%s2 + $0x40] sm:$0xf]
  %v840 = vld [vmem:[%s2 + $0x44] sm:$0xf]
  %v841 = vld [vmem:[%s2 + $0x48] sm:$0xf]
  %v842 = vld [vmem:[%s2 + $0x4c] sm:$0xf]
  %v843 = vld [vmem:[%s2 + $0x50] sm:$0xf]
  %v844 = vld [vmem:[%s2 + $0x54] sm:$0xf]
  %v845 = vld [vmem:[%s2 + $0x58] sm:$0xf]
  %v846 = vld [vmem:[%s2 + $0x5c] sm:$0xf]
  %v847 = vld [vmem:[%s2 + $0x60] sm:$0xf]
  %v848 = vld [vmem:[%s2 + $0x64] sm:$0xf]
  %v849 = vld [vmem:[%s2 + $0x68] sm:$0xf]
  %v850 = vld [vmem:[%s2 + $0x6c] sm:$0xf]
  %v851 = vld [vmem:[%s2 + $0x70] sm:$0xf]
  %v852 = vld [vmem:[%s2 + $0x74] sm:$0xf]
  %v853 = vld [vmem:[%s2 + $0x78] sm:$0xf]
  %v854 = vld [vmem:[%s2 + $0x7c] sm:$0xf]
  %v855 = vld [vmem:[%s2 + $0x80] sm:$0xf]
  %v856 = vld [vmem:[%s2 + $0x84] sm:$0xf]
  %v857 = vld [vmem:[%s2 + $0x88] sm:$0xf]
  %v858 = vld [vmem:[%s2 + $0x8c] sm:$0xf]
  %v859 = vld [vmem:[%s3] sm:$0x1]
  %v861 = vperm.slane %v859, 0
  %v899 = vunpack.c.l.b16 %v823
  %v900 = vunpack.c.l.b16 %v824
  %v901 = vunpack.c.l.b16 %v825
  %v902 = vunpack.c.l.b16 %v826
  %v903 = vunpack.c.l.b16 %v827
  %v904 = vunpack.c.l.b16 %v828
  %v905 = vunpack.c.l.b16 %v829
  %v906 = vunpack.c.l.b16 %v830
  %v907 = vunpack.c.l.b16 %v831
  %v908 = vunpack.c.l.b16 %v832
  %v909 = vunpack.c.l.b16 %v833
  %v910 = vunpack.c.l.b16 %v834
  %v911 = vunpack.c.l.b16 %v835
  %v912 = vunpack.c.l.b16 %v836
  %v913 = vunpack.c.l.b16 %v837
  %v914 = vunpack.c.l.b16 %v838
  %v915 = vunpack.c.l.b16 %v839
  %v916 = vunpack.c.l.b16 %v840
  %v917 = vunpack.c.l.b16 %v841
  %v918 = vunpack.c.l.b16 %v842
  %v919 = vunpack.c.l.b16 %v843
  %v920 = vunpack.c.l.b16 %v844
  %v921 = vunpack.c.l.b16 %v845
  %v922 = vunpack.c.l.b16 %v846
  %v923 = vunpack.c.l.b16 %v847
  %v924 = vunpack.c.l.b16 %v848
  %v925 = vunpack.c.l.b16 %v849
  %v926 = vunpack.c.l.b16 %v850
  %v927 = vunpack.c.l.b16 %v851
  %v928 = vunpack.c.l.b16 %v852
  %v929 = vunpack.c.l.b16 %v853
  %v930 = vunpack.c.l.b16 %v854
  %v931 = vunpack.c.l.b16 %v855
  %v932 = vunpack.c.l.b16 %v856
  %v933 = vunpack.c.l.b16 %v857
  %v934 = vunpack.c.l.b16 %v858
  %v935 = vpack.c.b16 %v900, %v899
  %v936 = vpack.c.b16 %v902, %v901
  %v937 = vpack.c.b16 %v904, %v903
  %v938 = vpack.c.b16 %v906, %v905
  %v939 = vpack.c.b16 %v908, %v907
  %v940 = vpack.c.b16 %v910, %v909
  %v941 = vpack.c.b16 %v912, %v911
  %v942 = vpack.c.b16 %v914, %v913
  %v943 = vpack.c.b16 %v916, %v915
  %v944 = vpack.c.b16 %v918, %v917
  %v945 = vpack.c.b16 %v920, %v919
  %v946 = vpack.c.b16 %v922, %v921
  %v947 = vpack.c.b16 %v924, %v923
  %v948 = vpack.c.b16 %v926, %v925
  %v949 = vpack.c.b16 %v928, %v927
  %v950 = vpack.c.b16 %v930, %v929
  %v951 = vpack.c.b16 %v932, %v931
  %v952 = vpack.c.b16 %v934, %v933
  %v972 = vsel %vm444, %v801, 0
  %v975 = vsel %vm444, %v804, 0
  %v978 = vsel %vm444, %v807, 0
  %v981 = vsel %vm444, %v810, 0
  %v984 = vsel %vm444, %v813, 0
  %v987 = vsel %vm444, %v816, 0
  %v990 = vsel %vm444, %v819, 0
  %v993 = vsel %vm444, %v822, 0
  %995 = vmatpush.bf16.msra.mxu0 %v942
  %996 = vmatpush.bf16.msra.mxu0 %v941
  %997 = vmatpush.bf16.msra.mxu0 %v940
  %998 = vmatpush.bf16.msra.mxu0 %v939
  %999 = vmatpush.bf16.msra.mxu0 %v938
  %1000 = vmatpush.bf16.msra.mxu0 %v937
  %1001 = vmatpush.bf16.msra.mxu0 %v936
  %1002 = vmatpush.bf16.msra.mxu0 %v935
  %1003 = vmatmul.bf16.gmra.mxu0 %v799
  %v1004 = vpop.f32.mrf.mxu0
  %v1005 = vadd.f32 %v861, %v1004
  %v1006 = vpop.f32.mrf.mxu0
  %v1007 = vadd.f32 %v861, %v1006
  %1008 = vmatmul.bf16.gmra.mxu0 %v802
  %v1009 = vpop.f32.mrf.mxu0
  %v1010 = vadd.f32 %v861, %v1009
  %v1011 = vpop.f32.mrf.mxu0
  %v1012 = vadd.f32 %v861, %v1011
  %1013 = vmatmul.bf16.gmra.mxu0 %v805
  %v1014 = vpop.f32.mrf.mxu0
  %v1015 = vadd.f32 %v861, %v1014
  %v1016 = vpop.f32.mrf.mxu0
  %v1017 = vadd.f32 %v861, %v1016
  %1018 = vmatmul.bf16.gmra.mxu0 %v808
  %v1019 = vpop.f32.mrf.mxu0
  %v1020 = vadd.f32 %v861, %v1019
  %v1021 = vpop.f32.mrf.mxu0
  %v1022 = vadd.f32 %v861, %v1021
  %1023 = vmatmul.bf16.gmra.mxu0 %v811
  %v1024 = vpop.f32.mrf.mxu0
  %v1025 = vadd.f32 %v861, %v1024
  %v1026 = vpop.f32.mrf.mxu0
  %v1027 = vadd.f32 %v861, %v1026
  %1028 = vmatmul.bf16.gmra.mxu0 %v814
  %v1029 = vpop.f32.mrf.mxu0
  %v1030 = vadd.f32 %v861, %v1029
  %v1031 = vpop.f32.mrf.mxu0
  %v1032 = vadd.f32 %v861, %v1031
  %1033 = vmatmul.bf16.gmra.mxu0 %v817
  %v1034 = vpop.f32.mrf.mxu0
  %v1035 = vadd.f32 %v861, %v1034
  %v1036 = vpop.f32.mrf.mxu0
  %v1037 = vadd.f32 %v861, %v1036
  %1038 = vmatmul.bf16.gmra.mxu0 %v820
  %v1039 = vpop.f32.mrf.mxu0
  %v1040 = vadd.f32 %v861, %v1039
  %v1041 = vpop.f32.mrf.mxu0
  %v1042 = vadd.f32 %v861, %v1041
  %1043 = vdwg.mxu0
  %1044 = vmatpush.bf16.msra.mxu0 %v950
  %1045 = vmatpush.bf16.msra.mxu0 %v949
  %1046 = vmatpush.bf16.msra.mxu0 %v948
  %1047 = vmatpush.bf16.msra.mxu0 %v947
  %1048 = vmatpush.bf16.msra.mxu0 %v946
  %1049 = vmatpush.bf16.msra.mxu0 %v945
  %1050 = vmatpush.bf16.msra.mxu0 %v944
  %1051 = vmatpush.bf16.msra.mxu0 %v943
  %1052 = vmatmul.bf16.gmra.mxu0 %v800
  %v1053 = vpop.f32.mrf.mxu0
  %v1054 = vadd.f32 %v1005, %v1053
  %v1055 = vpop.f32.mrf.mxu0
  %v1056 = vadd.f32 %v1007, %v1055
  %1057 = vmatmul.bf16.gmra.mxu0 %v803
  %v1058 = vpop.f32.mrf.mxu0
  %v1059 = vadd.f32 %v1010, %v1058
  %v1060 = vpop.f32.mrf.mxu0
  %v1061 = vadd.f32 %v1012, %v1060
  %1062 = vmatmul.bf16.gmra.mxu0 %v806
  %v1063 = vpop.f32.mrf.mxu0
  %v1064 = vadd.f32 %v1015, %v1063
  %v1065 = vpop.f32.mrf.mxu0
  %v1066 = vadd.f32 %v1017, %v1065
  %1067 = vmatmul.bf16.gmra.mxu0 %v809
  %v1068 = vpop.f32.mrf.mxu0
  %v1069 = vadd.f32 %v1020, %v1068
  %v1070 = vpop.f32.mrf.mxu0
  %v1071 = vadd.f32 %v1022, %v1070
  %1072 = vmatmul.bf16.gmra.mxu0 %v812
  %v1073 = vpop.f32.mrf.mxu0
  %v1074 = vadd.f32 %v1025, %v1073
  %v1075 = vpop.f32.mrf.mxu0
  %v1076 = vadd.f32 %v1027, %v1075
  %1077 = vmatmul.bf16.gmra.mxu0 %v815
  %v1078 = vpop.f32.mrf.mxu0
  %v1079 = vadd.f32 %v1030, %v1078
  %v1080 = vpop.f32.mrf.mxu0
  %v1081 = vadd.f32 %v1032, %v1080
  %1082 = vmatmul.bf16.gmra.mxu0 %v818
  %v1083 = vpop.f32.mrf.mxu0
  %v1084 = vadd.f32 %v1035, %v1083
  %v1085 = vpop.f32.mrf.mxu0
  %v1086 = vadd.f32 %v1037, %v1085
  %1087 = vmatmul.bf16.gmra.mxu0 %v821
  %v1088 = vpop.f32.mrf.mxu0
  %v1089 = vadd.f32 %v1040, %v1088
  %v1090 = vpop.f32.mrf.mxu0
  %v1091 = vadd.f32 %v1042, %v1090
  %1092 = vdwg.mxu0
  %1093 = vmatpush.bf16.msra.mxu0 0
  %1094 = vmatpush.bf16.msra.mxu0 0
  %1095 = vmatpush.bf16.msra.mxu0 0
  %1096 = vmatpush.bf16.msra.mxu0 0
  %1097 = vmatpush.bf16.msra.mxu0 0
  %1098 = vmatpush.bf16.msra.mxu0 0
  %1099 = vmatpush.bf16.msra.mxu0 %v952
  %1100 = vmatpush.bf16.msra.mxu0 %v951
  %1101 = vmatmul.bf16.gmra.mxu0 %v972
  %v1102 = vpop.f32.mrf.mxu0
  %v1103 = vadd.f32 %v1054, %v1102
  %v1104 = vpop.f32.mrf.mxu0
  %v1105 = vadd.f32 %v1056, %v1104
  %1106 = vmatmul.bf16.gmra.mxu0 %v975
  %v1107 = vpop.f32.mrf.mxu0
  %v1108 = vadd.f32 %v1059, %v1107
  %v1109 = vpop.f32.mrf.mxu0
  %v1110 = vadd.f32 %v1061, %v1109
  %1111 = vmatmul.bf16.gmra.mxu0 %v978
  %v1112 = vpop.f32.mrf.mxu0
  %v1113 = vadd.f32 %v1064, %v1112
  %v1114 = vpop.f32.mrf.mxu0
  %v1115 = vadd.f32 %v1066, %v1114
  %1116 = vmatmul.bf16.gmra.mxu0 %v981
  %v1117 = vpop.f32.mrf.mxu0
  %v1118 = vadd.f32 %v1069, %v1117
  %v1119 = vpop.f32.mrf.mxu0
  %v1120 = vadd.f32 %v1071, %v1119
  %1121 = vmatmul.bf16.gmra.mxu0 %v984
  %v1122 = vpop.f32.mrf.mxu0
  %v1123 = vadd.f32 %v1074, %v1122
  %v1124 = vpop.f32.mrf.mxu0
  %v1125 = vadd.f32 %v1076, %v1124
  %1126 = vmatmul.bf16.gmra.mxu0 %v987
  %v1127 = vpop.f32.mrf.mxu0
  %v1128 = vadd.f32 %v1079, %v1127
  %v1129 = vpop.f32.mrf.mxu0
  %v1130 = vadd.f32 %v1081, %v1129
  %1131 = vmatmul.bf16.gmra.mxu0 %v990
  %v1132 = vpop.f32.mrf.mxu0
  %v1133 = vadd.f32 %v1084, %v1132
  %v1134 = vpop.f32.mrf.mxu0
  %v1135 = vadd.f32 %v1086, %v1134
  %1136 = vmatmul.bf16.gmra.mxu0 %v993
  %v1137 = vpop.f32.mrf.mxu0
  %v1138 = vadd.f32 %v1089, %v1137
  %v1139 = vpop.f32.mrf.mxu0
  %v1140 = vadd.f32 %v1091, %v1139
  %1141 = vdwg.mxu0
  %v1142 = vmul.f32 %v1103, %v1103
  %v1143 = vmul.f32 %v1105, %v1105
  %v1144 = vmul.f32 %v1108, %v1108
  %v1145 = vmul.f32 %v1110, %v1110
  %v1146 = vmul.f32 %v1113, %v1113
  %v1147 = vmul.f32 %v1115, %v1115
  %v1148 = vmul.f32 %v1118, %v1118
  %v1149 = vmul.f32 %v1120, %v1120
  %v1150 = vmul.f32 %v1123, %v1123
  %v1151 = vmul.f32 %v1125, %v1125
  %v1152 = vmul.f32 %v1128, %v1128
  %v1153 = vmul.f32 %v1130, %v1130
  %v1154 = vmul.f32 %v1133, %v1133
  %v1155 = vmul.f32 %v1135, %v1135
  %v1156 = vmul.f32 %v1138, %v1138
  %v1157 = vmul.f32 %v1140, %v1140
  %v1158 = vmul.f32 %v1103, %v1142
  %v1159 = vmul.f32 %v1105, %v1143
  %v1160 = vmul.f32 %v1108, %v1144
  %v1161 = vmul.f32 %v1110, %v1145
  %v1162 = vmul.f32 %v1113, %v1146
  %v1163 = vmul.f32 %v1115, %v1147
  %v1164 = vmul.f32 %v1118, %v1148
  %v1165 = vmul.f32 %v1120, %v1149
  %v1166 = vmul.f32 %v1123, %v1150
  %v1167 = vmul.f32 %v1125, %v1151
  %v1168 = vmul.f32 %v1128, %v1152
  %v1169 = vmul.f32 %v1130, %v1153
  %v1170 = vmul.f32 %v1133, %v1154
  %v1171 = vmul.f32 %v1135, %v1155
  %v1172 = vmul.f32 %v1138, %v1156
  %v1173 = vmul.f32 %v1140, %v1157
  %v1174 = vmul.f32 %v1158, 0.044715
  %v1175 = vmul.f32 %v1159, 0.044715
  %v1176 = vmul.f32 %v1160, 0.044715
  %v1177 = vmul.f32 %v1161, 0.044715
  %v1178 = vmul.f32 %v1162, 0.044715
  %v1179 = vmul.f32 %v1163, 0.044715
  %v1180 = vmul.f32 %v1164, 0.044715
  %v1181 = vmul.f32 %v1165, 0.044715
  %v1182 = vmul.f32 %v1166, 0.044715
  %v1183 = vmul.f32 %v1167, 0.044715
  %v1184 = vmul.f32 %v1168, 0.044715
  %v1185 = vmul.f32 %v1169, 0.044715
  %v1186 = vmul.f32 %v1170, 0.044715
  %v1187 = vmul.f32 %v1171, 0.044715
  %v1188 = vmul.f32 %v1172, 0.044715
  %v1189 = vmul.f32 %v1173, 0.044715
  %v1190 = vadd.f32 %v1103, %v1174
  %v1191 = vadd.f32 %v1105, %v1175
  %v1192 = vadd.f32 %v1108, %v1176
  %v1193 = vadd.f32 %v1110, %v1177
  %v1194 = vadd.f32 %v1113, %v1178
  %v1195 = vadd.f32 %v1115, %v1179
  %v1196 = vadd.f32 %v1118, %v1180
  %v1197 = vadd.f32 %v1120, %v1181
  %v1198 = vadd.f32 %v1123, %v1182
  %v1199 = vadd.f32 %v1125, %v1183
  %v1200 = vadd.f32 %v1128, %v1184
  %v1201 = vadd.f32 %v1130, %v1185
  %v1202 = vadd.f32 %v1133, %v1186
  %v1203 = vadd.f32 %v1135, %v1187
  %v1204 = vadd.f32 %v1138, %v1188
  %v1205 = vadd.f32 %v1140, %v1189
  %v1206 = vmul.f32 %v1190, 0.7978846
  %v1207 = vmul.f32 %v1191, 0.7978846
  %v1208 = vmul.f32 %v1192, 0.7978846
  %v1209 = vmul.f32 %v1193, 0.7978846
  %v1210 = vmul.f32 %v1194, 0.7978846
  %v1211 = vmul.f32 %v1195, 0.7978846
  %v1212 = vmul.f32 %v1196, 0.7978846
  %v1213 = vmul.f32 %v1197, 0.7978846
  %v1214 = vmul.f32 %v1198, 0.7978846
  %v1215 = vmul.f32 %v1199, 0.7978846
  %v1216 = vmul.f32 %v1200, 0.7978846
  %v1217 = vmul.f32 %v1201, 0.7978846
  %v1218 = vmul.f32 %v1202, 0.7978846
  %v1219 = vmul.f32 %v1203, 0.7978846
  %v1220 = vmul.f32 %v1204, 0.7978846
  %v1221 = vmul.f32 %v1205, 0.7978846
  %v1222 = vtanh.pop %v1206
  %v1223 = vtanh.pop %v1207
  %v1224 = vtanh.pop %v1208
  %v1225 = vtanh.pop %v1209
  %v1226 = vtanh.pop %v1210
  %v1227 = vtanh.pop %v1211
  %v1228 = vtanh.pop %v1212
  %v1229 = vtanh.pop %v1213
  %v1230 = vtanh.pop %v1214
  %v1231 = vtanh.pop %v1215
  %v1232 = vtanh.pop %v1216
  %v1233 = vtanh.pop %v1217
  %v1234 = vtanh.pop %v1218
  %v1235 = vtanh.pop %v1219
  %v1236 = vtanh.pop %v1220
  %v1237 = vtanh.pop %v1221
  %v1238 = vadd.f32 %v1222, 1.0
  %v1239 = vadd.f32 %v1223, 1.0
  %v1240 = vadd.f32 %v1224, 1.0
  %v1241 = vadd.f32 %v1225, 1.0
  %v1242 = vadd.f32 %v1226, 1.0
  %v1243 = vadd.f32 %v1227, 1.0
  %v1244 = vadd.f32 %v1228, 1.0
  %v1245 = vadd.f32 %v1229, 1.0
  %v1246 = vadd.f32 %v1230, 1.0
  %v1247 = vadd.f32 %v1231, 1.0
  %v1248 = vadd.f32 %v1232, 1.0
  %v1249 = vadd.f32 %v1233, 1.0
  %v1250 = vadd.f32 %v1234, 1.0
  %v1251 = vadd.f32 %v1235, 1.0
  %v1252 = vadd.f32 %v1236, 1.0
  %v1253 = vadd.f32 %v1237, 1.0
  %v1254 = vmul.f32 %v1238, 0.5
  %v1255 = vmul.f32 %v1239, 0.5
  %v1256 = vmul.f32 %v1240, 0.5
  %v1257 = vmul.f32 %v1241, 0.5
  %v1258 = vmul.f32 %v1242, 0.5
  %v1259 = vmul.f32 %v1243, 0.5
  %v1260 = vmul.f32 %v1244, 0.5
  %v1261 = vmul.f32 %v1245, 0.5
  %v1262 = vmul.f32 %v1246, 0.5
  %v1263 = vmul.f32 %v1247, 0.5
  %v1264 = vmul.f32 %v1248, 0.5
  %v1265 = vmul.f32 %v1249, 0.5
  %v1266 = vmul.f32 %v1250, 0.5
  %v1267 = vmul.f32 %v1251, 0.5
  %v1268 = vmul.f32 %v1252, 0.5
  %v1269 = vmul.f32 %v1253, 0.5
  %v1270 = vmul.f32 %v1103, %v1254
  %v1271 = vmul.f32 %v1105, %v1255
  %v1272 = vmul.f32 %v1108, %v1256
  %v1273 = vmul.f32 %v1110, %v1257
  %v1274 = vmul.f32 %v1113, %v1258
  %v1275 = vmul.f32 %v1115, %v1259
  %v1276 = vmul.f32 %v1118, %v1260
  %v1277 = vmul.f32 %v1120, %v1261
  %v1278 = vmul.f32 %v1123, %v1262
  %v1279 = vmul.f32 %v1125, %v1263
  %v1280 = vmul.f32 %v1128, %v1264
  %v1281 = vmul.f32 %v1130, %v1265
  %v1282 = vmul.f32 %v1133, %v1266
  %v1283 = vmul.f32 %v1135, %v1267
  %v1284 = vmul.f32 %v1138, %v1268
  %v1285 = vmul.f32 %v1140, %v1269
  %v1286 = vpack.c.bf16 %v1271, %v1270
  %v1287 = vpack.c.bf16 %v1273, %v1272
  %v1288 = vpack.c.bf16 %v1275, %v1274
  %v1289 = vpack.c.bf16 %v1277, %v1276
  %v1290 = vpack.c.bf16 %v1279, %v1278
  %v1291 = vpack.c.bf16 %v1281, %v1280
  %v1292 = vpack.c.bf16 %v1283, %v1282
  %v1293 = vpack.c.bf16 %v1285, %v1284
  %v1294 = vld [vmem:[%s4] sm:$0xff]
  %v1295 = vld [vmem:[%s4 + $0x8] sm:$0xf]
  %v1296 = vld [vmem:[%s4 + $0xc] sm:$0xff]
  %v1297 = vld [vmem:[%s4 + $0x14] sm:$0xf]
  %v1298 = vld [vmem:[%s4 + $0x18] sm:$0xff]
  %v1299 = vld [vmem:[%s4 + $0x20] sm:$0xf]
  %v1300 = vld [vmem:[%s4 + $0x24] sm:$0xff]
  %v1301 = vld [vmem:[%s4 + $0x2c] sm:$0xf]
  %v1302 = vld [vmem:[%s4 + $0x30] sm:$0xff]
  %v1303 = vld [vmem:[%s4 + $0x38] sm:$0xf]
  %v1304 = vld [vmem:[%s4 + $0x3c] sm:$0xff]
  %v1305 = vld [vmem:[%s4 + $0x44] sm:$0xf]
  %v1306 = vld [vmem:[%s4 + $0x48] sm:$0xff]
  %v1307 = vld [vmem:[%s4 + $0x50] sm:$0xf]
  %v1308 = vld [vmem:[%s4 + $0x54] sm:$0xff]
  %v1309 = vld [vmem:[%s4 + $0x5c] sm:$0xf]
  %v1310 = vld [vmem:[%s4 + $0x60] sm:$0xff]
  %v1311 = vld [vmem:[%s4 + $0x68] sm:$0xf]
  %v1312 = vld [vmem:[%s4 + $0x6c] sm:$0xff]
  %v1313 = vld [vmem:[%s4 + $0x74] sm:$0xf]
  %v1314 = vld [vmem:[%s4 + $0x78] sm:$0xff]
  %v1315 = vld [vmem:[%s4 + $0x80] sm:$0xf]
  %v1316 = vld [vmem:[%s4 + $0x84] sm:$0xff]
  %v1317 = vld [vmem:[%s4 + $0x8c] sm:$0xf]
  %v1318 = vld [vmem:[%s4 + $0x90] sm:$0xff]
  %v1319 = vld [vmem:[%s4 + $0x98] sm:$0xf]
  %v1320 = vld [vmem:[%s4 + $0x9c] sm:$0xff]
  %v1321 = vld [vmem:[%s4 + $0xa4] sm:$0xf]
  %v1322 = vld [vmem:[%s4 + $0xa8] sm:$0xff]
  %v1323 = vld [vmem:[%s4 + $0xb0] sm:$0xf]
  %v1324 = vld [vmem:[%s4 + $0xb4] sm:$0xff]
  %v1325 = vld [vmem:[%s4 + $0xbc] sm:$0xf]
  %v1358 = vunpack.c.l.b16 %v1294
  %v1359 = vunpack.c.h.b16 %v1294
  %v1360 = vunpack.c.l.b16 %v1295
  %v1361 = vunpack.c.l.b16 %v1296
  %v1362 = vunpack.c.h.b16 %v1296
  %v1363 = vunpack.c.l.b16 %v1297
  %v1364 = vunpack.c.l.b16 %v1298
  %v1365 = vunpack.c.h.b16 %v1298
  %v1366 = vunpack.c.l.b16 %v1299
  %v1367 = vunpack.c.l.b16 %v1300
  %v1368 = vunpack.c.h.b16 %v1300
  %v1369 = vunpack.c.l.b16 %v1301
  %v1370 = vunpack.c.l.b16 %v1302
  %v1371 = vunpack.c.h.b16 %v1302
  %v1372 = vunpack.c.l.b16 %v1303
  %v1373 = vunpack.c.l.b16 %v1304
  %v1374 = vunpack.c.h.b16 %v1304
  %v1375 = vunpack.c.l.b16 %v1305
  %v1376 = vunpack.c.l.b16 %v1306
  %v1377 = vunpack.c.h.b16 %v1306
  %v1378 = vunpack.c.l.b16 %v1307
  %v1379 = vunpack.c.l.b16 %v1308
  %v1380 = vunpack.c.h.b16 %v1308
  %v1381 = vunpack.c.l.b16 %v1309
  %v1382 = vunpack.c.l.b16 %v1310
  %v1383 = vunpack.c.h.b16 %v1310
  %v1384 = vunpack.c.l.b16 %v1311
  %v1385 = vunpack.c.l.b16 %v1312
  %v1386 = vunpack.c.h.b16 %v1312
  %v1387 = vunpack.c.l.b16 %v1313
  %v1388 = vunpack.c.l.b16 %v1314
  %v1389 = vunpack.c.h.b16 %v1314
  %v1390 = vunpack.c.l.b16 %v1315
  %v1391 = vunpack.c.l.b16 %v1316
  %v1392 = vunpack.c.h.b16 %v1316
  %v1393 = vunpack.c.l.b16 %v1317
  %v1394 = vunpack.c.l.b16 %v1318
  %v1395 = vunpack.c.h.b16 %v1318
  %v1396 = vunpack.c.l.b16 %v1319
  %v1397 = vunpack.c.l.b16 %v1320
  %v1398 = vunpack.c.h.b16 %v1320
  %v1399 = vunpack.c.l.b16 %v1321
  %v1400 = vunpack.c.l.b16 %v1322
  %v1401 = vunpack.c.h.b16 %v1322
  %v1402 = vunpack.c.l.b16 %v1323
  %v1403 = vunpack.c.l.b16 %v1324
  %v1404 = vunpack.c.h.b16 %v1324
  %v1405 = vunpack.c.l.b16 %v1325
  %v1406 = vpack.c.b16 %v1361, %v1358
  %v1407 = vpack.c.b16 %v1362, %v1359
  %v1408 = vpack.c.b16 %v1363, %v1360
  %v1409 = vpack.c.b16 %v1367, %v1364
  %v1410 = vpack.c.b16 %v1368, %v1365
  %v1411 = vpack.c.b16 %v1369, %v1366
  %v1412 = vpack.c.b16 %v1373, %v1370
  %v1413 = vpack.c.b16 %v1374, %v1371
  %v1414 = vpack.c.b16 %v1375, %v1372
  %v1415 = vpack.c.b16 %v1379, %v1376
  %v1416 = vpack.c.b16 %v1380, %v1377
  %v1417 = vpack.c.b16 %v1381, %v1378
  %v1418 = vpack.c.b16 %v1385, %v1382
  %v1419 = vpack.c.b16 %v1386, %v1383
  %v1420 = vpack.c.b16 %v1387, %v1384
  %v1421 = vpack.c.b16 %v1391, %v1388
  %v1422 = vpack.c.b16 %v1392, %v1389
  %v1423 = vpack.c.b16 %v1393, %v1390
  %v1424 = vpack.c.b16 %v1397, %v1394
  %v1425 = vpack.c.b16 %v1398, %v1395
  %v1426 = vpack.c.b16 %v1399, %v1396
  %v1427 = vpack.c.b16 %v1403, %v1400
  %v1428 = vpack.c.b16 %v1404, %v1401
  %v1429 = vpack.c.b16 %v1405, %v1402
  %1454 = vmatpush.bf16.msra.mxu0 %v1427
  %1455 = vmatpush.bf16.msra.mxu0 %v1424
  %1456 = vmatpush.bf16.msra.mxu0 %v1421
  %1457 = vmatpush.bf16.msra.mxu0 %v1418
  %1458 = vmatpush.bf16.msra.mxu0 %v1415
  %1459 = vmatpush.bf16.msra.mxu0 %v1412
  %1460 = vmatpush.bf16.msra.mxu0 %v1409
  %1461 = vmatpush.bf16.msra.mxu0 %v1406
  %1462 = vmatmul.bf16.gmra.mxu0 %v1286
  %v1463 = vpop.f32.mrf.mxu0
  %v1464 = vadd.f32 0.0, %v1463
  %v1465 = vpop.f32.mrf.mxu0
  %v1466 = vadd.f32 0.0, %v1465
  %1467 = vmatmul.bf16.gmra.mxu0 %v1287
  %v1468 = vpop.f32.mrf.mxu0
  %v1469 = vadd.f32 0.0, %v1468
  %v1470 = vpop.f32.mrf.mxu0
  %v1471 = vadd.f32 0.0, %v1470
  %1472 = vmatmul.bf16.gmra.mxu0 %v1288
  %v1473 = vpop.f32.mrf.mxu0
  %v1474 = vadd.f32 0.0, %v1473
  %v1475 = vpop.f32.mrf.mxu0
  %v1476 = vadd.f32 0.0, %v1475
  %1477 = vmatmul.bf16.gmra.mxu0 %v1289
  %v1478 = vpop.f32.mrf.mxu0
  %v1479 = vadd.f32 0.0, %v1478
  %v1480 = vpop.f32.mrf.mxu0
  %v1481 = vadd.f32 0.0, %v1480
  %1482 = vmatmul.bf16.gmra.mxu0 %v1290
  %v1483 = vpop.f32.mrf.mxu0
  %v1484 = vadd.f32 0.0, %v1483
  %v1485 = vpop.f32.mrf.mxu0
  %v1486 = vadd.f32 0.0, %v1485
  %1487 = vmatmul.bf16.gmra.mxu0 %v1291
  %v1488 = vpop.f32.mrf.mxu0
  %v1489 = vadd.f32 0.0, %v1488
  %v1490 = vpop.f32.mrf.mxu0
  %v1491 = vadd.f32 0.0, %v1490
  %1492 = vmatmul.bf16.gmra.mxu0 %v1292
  %v1493 = vpop.f32.mrf.mxu0
  %v1494 = vadd.f32 0.0, %v1493
  %v1495 = vpop.f32.mrf.mxu0
  %v1496 = vadd.f32 0.0, %v1495
  %1497 = vmatmul.bf16.gmra.mxu0 %v1293
  %v1498 = vpop.f32.mrf.mxu0
  %v1499 = vadd.f32 0.0, %v1498
  %v1500 = vpop.f32.mrf.mxu0
  %v1501 = vadd.f32 0.0, %v1500
  %1502 = vdwg.mxu0
  %1503 = vmatpush.bf16.msra.mxu0 %v1428
  %1504 = vmatpush.bf16.msra.mxu0 %v1425
  %1505 = vmatpush.bf16.msra.mxu0 %v1422
  %1506 = vmatpush.bf16.msra.mxu0 %v1419
  %1507 = vmatpush.bf16.msra.mxu0 %v1416
  %1508 = vmatpush.bf16.msra.mxu0 %v1413
  %1509 = vmatpush.bf16.msra.mxu0 %v1410
  %1510 = vmatpush.bf16.msra.mxu0 %v1407
  %1511 = vmatmul.bf16.gmra.mxu0 %v1286
  %v1512 = vpop.f32.mrf.mxu0
  %v1513 = vadd.f32 0.0, %v1512
  %v1514 = vpop.f32.mrf.mxu0
  %v1515 = vadd.f32 0.0, %v1514
  %1516 = vmatmul.bf16.gmra.mxu0 %v1287
  %v1517 = vpop.f32.mrf.mxu0
  %v1518 = vadd.f32 0.0, %v1517
  %v1519 = vpop.f32.mrf.mxu0
  %v1520 = vadd.f32 0.0, %v1519
  %1521 = vmatmul.bf16.gmra.mxu0 %v1288
  %v1522 = vpop.f32.mrf.mxu0
  %v1523 = vadd.f32 0.0, %v1522
  %v1524 = vpop.f32.mrf.mxu0
  %v1525 = vadd.f32 0.0, %v1524
  %1526 = vmatmul.bf16.gmra.mxu0 %v1289
  %v1527 = vpop.f32.mrf.mxu0
  %v1528 = vadd.f32 0.0, %v1527
  %v1529 = vpop.f32.mrf.mxu0
  %v1530 = vadd.f32 0.0, %v1529
  %1531 = vmatmul.bf16.gmra.mxu0 %v1290
  %v1532 = vpop.f32.mrf.mxu0
  %v1533 = vadd.f32 0.0, %v1532
  %v1534 = vpop.f32.mrf.mxu0
  %v1535 = vadd.f32 0.0, %v1534
  %1536 = vmatmul.bf16.gmra.mxu0 %v1291
  %v1537 = vpop.f32.mrf.mxu0
  %v1538 = vadd.f32 0.0, %v1537
  %v1539 = vpop.f32.mrf.mxu0
  %v1540 = vadd.f32 0.0, %v1539
  %1541 = vmatmul.bf16.gmra.mxu0 %v1292
  %v1542 = vpop.f32.mrf.mxu0
  %v1543 = vadd.f32 0.0, %v1542
  %v1544 = vpop.f32.mrf.mxu0
  %v1545 = vadd.f32 0.0, %v1544
  %1546 = vmatmul.bf16.gmra.mxu0 %v1293
  %v1547 = vpop.f32.mrf.mxu0
  %v1548 = vadd.f32 0.0, %v1547
  %v1549 = vpop.f32.mrf.mxu0
  %v1550 = vadd.f32 0.0, %v1549
  %1551 = vdwg.mxu0
  %1552 = vmatpush.bf16.msra.mxu0 %v1429
  %1553 = vmatpush.bf16.msra.mxu0 %v1426
  %1554 = vmatpush.bf16.msra.mxu0 %v1423
  %1555 = vmatpush.bf16.msra.mxu0 %v1420
  %1556 = vmatpush.bf16.msra.mxu0 %v1417
  %1557 = vmatpush.bf16.msra.mxu0 %v1414
  %1558 = vmatpush.bf16.msra.mxu0 %v1411
  %1559 = vmatpush.bf16.msra.mxu0 %v1408
  %1560 = vmatmul.bf16.gmra.mxu0 %v1286
  %v1561 = vpop.f32.mrf.mxu0
  %v1562 = vadd.f32 0.0, %v1561
  %v1563 = vpop.f32.mrf.mxu0
  %v1564 = vadd.f32 0.0, %v1563
  %1565 = vmatmul.bf16.gmra.mxu0 %v1287
  %v1566 = vpop.f32.mrf.mxu0
  %v1567 = vadd.f32 0.0, %v1566
  %v1568 = vpop.f32.mrf.mxu0
  %v1569 = vadd.f32 0.0, %v1568
  %1570 = vmatmul.bf16.gmra.mxu0 %v1288
  %v1571 = vpop.f32.mrf.mxu0
  %v1572 = vadd.f32 0.0, %v1571
  %v1573 = vpop.f32.mrf.mxu0
  %v1574 = vadd.f32 0.0, %v1573
  %1575 = vmatmul.bf16.gmra.mxu0 %v1289
  %v1576 = vpop.f32.mrf.mxu0
  %v1577 = vadd.f32 0.0, %v1576
  %v1578 = vpop.f32.mrf.mxu0
  %v1579 = vadd.f32 0.0, %v1578
  %1580 = vmatmul.bf16.gmra.mxu0 %v1290
  %v1581 = vpop.f32.mrf.mxu0
  %v1582 = vadd.f32 0.0, %v1581
  %v1583 = vpop.f32.mrf.mxu0
  %v1584 = vadd.f32 0.0, %v1583
  %1585 = vmatmul.bf16.gmra.mxu0 %v1291
  %v1586 = vpop.f32.mrf.mxu0
  %v1587 = vadd.f32 0.0, %v1586
  %v1588 = vpop.f32.mrf.mxu0
  %v1589 = vadd.f32 0.0, %v1588
  %1590 = vmatmul.bf16.gmra.mxu0 %v1292
  %v1591 = vpop.f32.mrf.mxu0
  %v1592 = vadd.f32 0.0, %v1591
  %v1593 = vpop.f32.mrf.mxu0
  %v1594 = vadd.f32 0.0, %v1593
  %1595 = vmatmul.bf16.gmra.mxu0 %v1293
  %v1596 = vpop.f32.mrf.mxu0
  %v1597 = vadd.f32 0.0, %v1596
  %v1598 = vpop.f32.mrf.mxu0
  %v1599 = vadd.f32 0.0, %v1598
  %1600 = vdwg.mxu0
  %1601 = vrot.lane.b32.xlu0 %v56, 2
  %v1602 = vpop.permute.xlu0 %1601
  %1603 = vrot.lane.b32.xlu0 %v57, 2
  %v1604 = vpop.permute.xlu0 %1603
  %1605 = vrot.lane.b32.xlu0 %v58, 2
  %v1606 = vpop.permute.xlu0 %1605
  %1607 = vrot.lane.b32.xlu0 %v59, 2
  %v1608 = vpop.permute.xlu0 %1607
  %1609 = vrot.lane.b32.xlu0 %v60, 2
  %v1610 = vpop.permute.xlu0 %1609
  %1611 = vrot.lane.b32.xlu0 %v61, 2
  %v1612 = vpop.permute.xlu0 %1611
  %1613 = vrot.lane.b32.xlu0 %v62, 2
  %v1614 = vpop.permute.xlu0 %1613
  %1615 = vrot.lane.b32.xlu0 %v63, 2
  %v1616 = vpop.permute.xlu0 %1615
  %1617 = vrot.lane.b32.xlu0 %v64, 2
  %v1618 = vpop.permute.xlu0 %1617
  %1619 = vrot.lane.b32.xlu0 %v65, 2
  %v1620 = vpop.permute.xlu0 %1619
  %1621 = vrot.lane.b32.xlu0 %v66, 2
  %v1622 = vpop.permute.xlu0 %1621
  %1623 = vrot.lane.b32.xlu0 %v67, 2
  %v1624 = vpop.permute.xlu0 %1623
  %1625 = vrot.lane.b32.xlu0 %v68, 2
  %v1626 = vpop.permute.xlu0 %1625
  %1627 = vrot.lane.b32.xlu0 %v69, 2
  %v1628 = vpop.permute.xlu0 %1627
  %1629 = vrot.lane.b32.xlu0 %v70, 2
  %v1630 = vpop.permute.xlu0 %1629
  %1631 = vrot.lane.b32.xlu0 %v71, 2
  %v1632 = vpop.permute.xlu0 %1631
  %v1649 = vmul.f32 %v56, %v1602
  %v1650 = vmul.f32 %v57, %v1604
  %v1651 = vmul.f32 %v58, %v1606
  %v1652 = vmul.f32 %v59, %v1608
  %v1653 = vmul.f32 %v60, %v1610
  %v1654 = vmul.f32 %v61, %v1612
  %v1655 = vmul.f32 %v62, %v1614
  %v1656 = vmul.f32 %v63, %v1616
  %v1657 = vmul.f32 %v64, %v1618
  %v1658 = vmul.f32 %v65, %v1620
  %v1659 = vmul.f32 %v66, %v1622
  %v1660 = vmul.f32 %v67, %v1624
  %v1661 = vmul.f32 %v68, %v1626
  %v1662 = vmul.f32 %v69, %v1628
  %v1663 = vmul.f32 %v70, %v1630
  %v1664 = vmul.f32 %v71, %v1632
  %1665 = vrot.lane.b32.xlu0 %v56, 1
  %v1666 = vpop.permute.xlu0 %1665
  %1667 = vrot.lane.b32.xlu0 %v57, 1
  %v1668 = vpop.permute.xlu0 %1667
  %1669 = vrot.lane.b32.xlu0 %v58, 1
  %v1670 = vpop.permute.xlu0 %1669
  %1671 = vrot.lane.b32.xlu0 %v59, 1
  %v1672 = vpop.permute.xlu0 %1671
  %1673 = vrot.lane.b32.xlu0 %v60, 1
  %v1674 = vpop.permute.xlu0 %1673
  %1675 = vrot.lane.b32.xlu0 %v61, 1
  %v1676 = vpop.permute.xlu0 %1675
  %1677 = vrot.lane.b32.xlu0 %v62, 1
  %v1678 = vpop.permute.xlu0 %1677
  %1679 = vrot.lane.b32.xlu0 %v63, 1
  %v1680 = vpop.permute.xlu0 %1679
  %1681 = vrot.lane.b32.xlu0 %v64, 1
  %v1682 = vpop.permute.xlu0 %1681
  %1683 = vrot.lane.b32.xlu0 %v65, 1
  %v1684 = vpop.permute.xlu0 %1683
  %1685 = vrot.lane.b32.xlu0 %v66, 1
  %v1686 = vpop.permute.xlu0 %1685
  %1687 = vrot.lane.b32.xlu0 %v67, 1
  %v1688 = vpop.permute.xlu0 %1687
  %1689 = vrot.lane.b32.xlu0 %v68, 1
  %v1690 = vpop.permute.xlu0 %1689
  %1691 = vrot.lane.b32.xlu0 %v69, 1
  %v1692 = vpop.permute.xlu0 %1691
  %1693 = vrot.lane.b32.xlu0 %v70, 1
  %v1694 = vpop.permute.xlu0 %1693
  %1695 = vrot.lane.b32.xlu0 %v71, 1
  %v1696 = vpop.permute.xlu0 %1695
  %v1713 = vmul.f32 %v56, %v1666
  %v1714 = vmul.f32 %v57, %v1668
  %v1715 = vmul.f32 %v58, %v1670
  %v1716 = vmul.f32 %v59, %v1672
  %v1717 = vmul.f32 %v60, %v1674
  %v1718 = vmul.f32 %v61, %v1676
  %v1719 = vmul.f32 %v62, %v1678
  %v1720 = vmul.f32 %v63, %v1680
  %v1721 = vmul.f32 %v64, %v1682
  %v1722 = vmul.f32 %v65, %v1684
  %v1723 = vmul.f32 %v66, %v1686
  %v1724 = vmul.f32 %v67, %v1688
  %v1725 = vmul.f32 %v68, %v1690
  %v1726 = vmul.f32 %v69, %v1692
  %v1727 = vmul.f32 %v70, %v1694
  %v1728 = vmul.f32 %v71, %v1696
  %1729 = vrot.lane.b32.xlu0 %v56, 3
  %v1730 = vpop.permute.xlu0 %1729
  %1731 = vrot.lane.b32.xlu0 %v57, 3
  %v1732 = vpop.permute.xlu0 %1731
  %1733 = vrot.lane.b32.xlu0 %v58, 3
  %v1734 = vpop.permute.xlu0 %1733
  %1735 = vrot.lane.b32.xlu0 %v59, 3
  %v1736 = vpop.permute.xlu0 %1735
  %1737 = vrot.lane.b32.xlu0 %v60, 3
  %v1738 = vpop.permute.xlu0 %1737
  %1739 = vrot.lane.b32.xlu0 %v61, 3
  %v1740 = vpop.permute.xlu0 %1739
  %1741 = vrot.lane.b32.xlu0 %v62, 3
  %v1742 = vpop.permute.xlu0 %1741
  %1743 = vrot.lane.b32.xlu0 %v63, 3
  %v1744 = vpop.permute.xlu0 %1743
  %1745 = vrot.lane.b32.xlu0 %v64, 3
  %v1746 = vpop.permute.xlu0 %1745
  %1747 = vrot.lane.b32.xlu0 %v65, 3
  %v1748 = vpop.permute.xlu0 %1747
  %1749 = vrot.lane.b32.xlu0 %v66, 3
  %v1750 = vpop.permute.xlu0 %1749
  %1751 = vrot.lane.b32.xlu0 %v67, 3
  %v1752 = vpop.permute.xlu0 %1751
  %1753 = vrot.lane.b32.xlu0 %v68, 3
  %v1754 = vpop.permute.xlu0 %1753
  %1755 = vrot.lane.b32.xlu0 %v69, 3
  %v1756 = vpop.permute.xlu0 %1755
  %1757 = vrot.lane.b32.xlu0 %v70, 3
  %v1758 = vpop.permute.xlu0 %1757
  %1759 = vrot.lane.b32.xlu0 %v71, 3
  %v1760 = vpop.permute.xlu0 %1759
  %v1777 = vmul.f32 %v56, %v1730
  %v1778 = vmul.f32 %v57, %v1732
  %v1779 = vmul.f32 %v58, %v1734
  %v1780 = vmul.f32 %v59, %v1736
  %v1781 = vmul.f32 %v60, %v1738
  %v1782 = vmul.f32 %v61, %v1740
  %v1783 = vmul.f32 %v62, %v1742
  %v1784 = vmul.f32 %v63, %v1744
  %v1785 = vmul.f32 %v64, %v1746
  %v1786 = vmul.f32 %v65, %v1748
  %v1787 = vmul.f32 %v66, %v1750
  %v1788 = vmul.f32 %v67, %v1752
  %v1789 = vmul.f32 %v68, %v1754
  %v1790 = vmul.f32 %v69, %v1756
  %v1791 = vmul.f32 %v70, %v1758
  %v1792 = vmul.f32 %v71, %v1760
  %1794 = vset.pattern.permute.xlu0 2
  %1795 = vperm.xlu0 %1794, %v1649
  %v1796 = vpop.permute.xlu0 %1795
  %1799 = vset.pattern.permute.xlu0 2
  %1800 = vperm.xlu0 %1799, %v1650
  %v1801 = vpop.permute.xlu0 %1800
  %1804 = vset.pattern.permute.xlu0 2
  %1805 = vperm.xlu0 %1804, %v1651
  %v1806 = vpop.permute.xlu0 %1805
  %1809 = vset.pattern.permute.xlu0 2
  %1810 = vperm.xlu0 %1809, %v1652
  %v1811 = vpop.permute.xlu0 %1810
  %1814 = vset.pattern.permute.xlu0 2
  %1815 = vperm.xlu0 %1814, %v1653
  %v1816 = vpop.permute.xlu0 %1815
  %1819 = vset.pattern.permute.xlu0 2
  %1820 = vperm.xlu0 %1819, %v1654
  %v1821 = vpop.permute.xlu0 %1820
  %1824 = vset.pattern.permute.xlu0 2
  %1825 = vperm.xlu0 %1824, %v1655
  %v1826 = vpop.permute.xlu0 %1825
  %1829 = vset.pattern.permute.xlu0 2
  %1830 = vperm.xlu0 %1829, %v1656
  %v1831 = vpop.permute.xlu0 %1830
  %1834 = vset.pattern.permute.xlu0 2
  %1835 = vperm.xlu0 %1834, %v1657
  %v1836 = vpop.permute.xlu0 %1835
  %1839 = vset.pattern.permute.xlu0 2
  %1840 = vperm.xlu0 %1839, %v1658
  %v1841 = vpop.permute.xlu0 %1840
  %1844 = vset.pattern.permute.xlu0 2
  %1845 = vperm.xlu0 %1844, %v1659
  %v1846 = vpop.permute.xlu0 %1845
  %1849 = vset.pattern.permute.xlu0 2
  %1850 = vperm.xlu0 %1849, %v1660
  %v1851 = vpop.permute.xlu0 %1850
  %1854 = vset.pattern.permute.xlu0 2
  %1855 = vperm.xlu0 %1854, %v1661
  %v1856 = vpop.permute.xlu0 %1855
  %1859 = vset.pattern.permute.xlu0 2
  %1860 = vperm.xlu0 %1859, %v1662
  %v1861 = vpop.permute.xlu0 %1860
  %1864 = vset.pattern.permute.xlu0 2
  %1865 = vperm.xlu0 %1864, %v1663
  %v1866 = vpop.permute.xlu0 %1865
  %1869 = vset.pattern.permute.xlu0 2
  %1870 = vperm.xlu0 %1869, %v1664
  %v1871 = vpop.permute.xlu0 %1870
  %v1873 = vmul.f32 %v1464, %v1796
  %v1874 = vmul.f32 %v1466, %v1801
  %v1875 = vmul.f32 %v1469, %v1806
  %v1876 = vmul.f32 %v1471, %v1811
  %v1877 = vmul.f32 %v1474, %v1816
  %v1878 = vmul.f32 %v1476, %v1821
  %v1879 = vmul.f32 %v1479, %v1826
  %v1880 = vmul.f32 %v1481, %v1831
  %v1881 = vmul.f32 %v1484, %v1836
  %v1882 = vmul.f32 %v1486, %v1841
  %v1883 = vmul.f32 %v1489, %v1846
  %v1884 = vmul.f32 %v1491, %v1851
  %v1885 = vmul.f32 %v1494, %v1856
  %v1886 = vmul.f32 %v1496, %v1861
  %v1887 = vmul.f32 %v1499, %v1866
  %v1888 = vmul.f32 %v1501, %v1871
  %v1889 = vrot.slane %v1873, 7
  %v1890 = vrot.slane %v1874, 7
  %v1891 = vrot.slane %v1875, 7
  %v1892 = vrot.slane %v1876, 7
  %v1893 = vrot.slane %v1877, 7
  %v1894 = vrot.slane %v1878, 7
  %v1895 = vrot.slane %v1879, 7
  %v1896 = vrot.slane %v1880, 7
  %v1897 = vrot.slane %v1881, 7
  %v1898 = vrot.slane %v1882, 7
  %v1899 = vrot.slane %v1883, 7
  %v1900 = vrot.slane %v1884, 7
  %v1901 = vrot.slane %v1885, 7
  %v1902 = vrot.slane %v1886, 7
  %v1903 = vrot.slane %v1887, 7
  %v1904 = vrot.slane %v1888, 7
  %v1905 = vsel %vm186, %v1903, %v1904
  %v1906 = vsel %vm186, %v1902, %v1903
  %v1907 = vsel %vm186, %v1901, %v1902
  %v1908 = vsel %vm186, %v1900, %v1901
  %v1909 = vsel %vm186, %v1899, %v1900
  %v1910 = vsel %vm186, %v1898, %v1899
  %v1911 = vsel %vm186, %v1897, %v1898
  %v1912 = vsel %vm186, %v1896, %v1897
  %v1913 = vsel %vm186, %v1895, %v1896
  %v1914 = vsel %vm186, %v1894, %v1895
  %v1915 = vsel %vm186, %v1893, %v1894
  %v1916 = vsel %vm186, %v1892, %v1893
  %v1917 = vsel %vm186, %v1891, %v1892
  %v1918 = vsel %vm186, %v1890, %v1891
  %v1919 = vsel %vm186, %v1889, %v1890
  %v1920 = vsel %vm186, %v1904, %v1889
  %v1921 = vadd.f32 %v1513, %v1905
  %v1922 = vadd.f32 %v1515, %v1920
  %v1923 = vadd.f32 %v1518, %v1919
  %v1924 = vadd.f32 %v1520, %v1918
  %v1925 = vadd.f32 %v1523, %v1917
  %v1926 = vadd.f32 %v1525, %v1916
  %v1927 = vadd.f32 %v1528, %v1915
  %v1928 = vadd.f32 %v1530, %v1914
  %v1929 = vadd.f32 %v1533, %v1913
  %v1930 = vadd.f32 %v1535, %v1912
  %v1931 = vadd.f32 %v1538, %v1911
  %v1932 = vadd.f32 %v1540, %v1910
  %v1933 = vadd.f32 %v1543, %v1909
  %v1934 = vadd.f32 %v1545, %v1908
  %v1935 = vadd.f32 %v1548, %v1907
  %v1936 = vadd.f32 %v1550, %v1906
  %v1937 = vmul.f32 %v1464, %v480
  %v1938 = vmul.f32 %v1466, %v484
  %v1939 = vmul.f32 %v1469, %v488
  %v1940 = vmul.f32 %v1471, %v492
  %v1941 = vmul.f32 %v1474, %v496
  %v1942 = vmul.f32 %v1476, %v500
  %v1943 = vmul.f32 %v1479, %v504
  %v1944 = vmul.f32 %v1481, %v508
  %v1945 = vmul.f32 %v1484, %v512
  %v1946 = vmul.f32 %v1486, %v516
  %v1947 = vmul.f32 %v1489, %v520
  %v1948 = vmul.f32 %v1491, %v524
  %v1949 = vmul.f32 %v1494, %v528
  %v1950 = vmul.f32 %v1496, %v532
  %v1951 = vmul.f32 %v1499, %v536
  %v1952 = vmul.f32 %v1501, %v540
  %1969 = vrot.lane.b32.xlu0 %v1937, 96
  %v1970 = vpop.permute.xlu0 %1969
  %1971 = vrot.lane.b32.xlu0 %v1938, 96
  %v1972 = vpop.permute.xlu0 %1971
  %1973 = vrot.lane.b32.xlu0 %v1939, 96
  %v1974 = vpop.permute.xlu0 %1973
  %1975 = vrot.lane.b32.xlu0 %v1940, 96
  %v1976 = vpop.permute.xlu0 %1975
  %1977 = vrot.lane.b32.xlu0 %v1941, 96
  %v1978 = vpop.permute.xlu0 %1977
  %1979 = vrot.lane.b32.xlu0 %v1942, 96
  %v1980 = vpop.permute.xlu0 %1979
  %1981 = vrot.lane.b32.xlu0 %v1943, 96
  %v1982 = vpop.permute.xlu0 %1981
  %1983 = vrot.lane.b32.xlu0 %v1944, 96
  %v1984 = vpop.permute.xlu0 %1983
  %1985 = vrot.lane.b32.xlu0 %v1945, 96
  %v1986 = vpop.permute.xlu0 %1985
  %1987 = vrot.lane.b32.xlu0 %v1946, 96
  %v1988 = vpop.permute.xlu0 %1987
  %1989 = vrot.lane.b32.xlu0 %v1947, 96
  %v1990 = vpop.permute.xlu0 %1989
  %1991 = vrot.lane.b32.xlu0 %v1948, 96
  %v1992 = vpop.permute.xlu0 %1991
  %1993 = vrot.lane.b32.xlu0 %v1949, 96
  %v1994 = vpop.permute.xlu0 %1993
  %1995 = vrot.lane.b32.xlu0 %v1950, 96
  %v1996 = vpop.permute.xlu0 %1995
  %1997 = vrot.lane.b32.xlu0 %v1951, 96
  %v1998 = vpop.permute.xlu0 %1997
  %1999 = vrot.lane.b32.xlu0 %v1952, 96
  %v2000 = vpop.permute.xlu0 %1999
  %v2017 = vadd.f32 %v1921, %v2000
  %v2018 = vadd.f32 %v1922, %v1970
  %v2019 = vadd.f32 %v1923, %v1972
  %v2020 = vadd.f32 %v1924, %v1974
  %v2021 = vadd.f32 %v1925, %v1976
  %v2022 = vadd.f32 %v1926, %v1978
  %v2023 = vadd.f32 %v1927, %v1980
  %v2024 = vadd.f32 %v1928, %v1982
  %v2025 = vadd.f32 %v1929, %v1984
  %v2026 = vadd.f32 %v1930, %v1986
  %v2027 = vadd.f32 %v1931, %v1988
  %v2028 = vadd.f32 %v1932, %v1990
  %v2029 = vadd.f32 %v1933, %v1992
  %v2030 = vadd.f32 %v1934, %v1994
  %v2031 = vadd.f32 %v1935, %v1996
  %v2032 = vadd.f32 %v1936, %v1998
  %2034 = vset.pattern.permute.xlu0 2
  %2035 = vperm.xlu0 %2034, %v1713
  %v2036 = vpop.permute.xlu0 %2035
  %2039 = vset.pattern.permute.xlu0 2
  %2040 = vperm.xlu0 %2039, %v1714
  %v2041 = vpop.permute.xlu0 %2040
  %2044 = vset.pattern.permute.xlu0 2
  %2045 = vperm.xlu0 %2044, %v1715
  %v2046 = vpop.permute.xlu0 %2045
  %2049 = vset.pattern.permute.xlu0 2
  %2050 = vperm.xlu0 %2049, %v1716
  %v2051 = vpop.permute.xlu0 %2050
  %2054 = vset.pattern.permute.xlu0 2
  %2055 = vperm.xlu0 %2054, %v1717
  %v2056 = vpop.permute.xlu0 %2055
  %2059 = vset.pattern.permute.xlu0 2
  %2060 = vperm.xlu0 %2059, %v1718
  %v2061 = vpop.permute.xlu0 %2060
  %2064 = vset.pattern.permute.xlu0 2
  %2065 = vperm.xlu0 %2064, %v1719
  %v2066 = vpop.permute.xlu0 %2065
  %2069 = vset.pattern.permute.xlu0 2
  %2070 = vperm.xlu0 %2069, %v1720
  %v2071 = vpop.permute.xlu0 %2070
  %2074 = vset.pattern.permute.xlu0 2
  %2075 = vperm.xlu0 %2074, %v1721
  %v2076 = vpop.permute.xlu0 %2075
  %2079 = vset.pattern.permute.xlu0 2
  %2080 = vperm.xlu0 %2079, %v1722
  %v2081 = vpop.permute.xlu0 %2080
  %2084 = vset.pattern.permute.xlu0 2
  %2085 = vperm.xlu0 %2084, %v1723
  %v2086 = vpop.permute.xlu0 %2085
  %2089 = vset.pattern.permute.xlu0 2
  %2090 = vperm.xlu0 %2089, %v1724
  %v2091 = vpop.permute.xlu0 %2090
  %2094 = vset.pattern.permute.xlu0 2
  %2095 = vperm.xlu0 %2094, %v1725
  %v2096 = vpop.permute.xlu0 %2095
  %2099 = vset.pattern.permute.xlu0 2
  %2100 = vperm.xlu0 %2099, %v1726
  %v2101 = vpop.permute.xlu0 %2100
  %2104 = vset.pattern.permute.xlu0 2
  %2105 = vperm.xlu0 %2104, %v1727
  %v2106 = vpop.permute.xlu0 %2105
  %2109 = vset.pattern.permute.xlu0 2
  %2110 = vperm.xlu0 %2109, %v1728
  %v2111 = vpop.permute.xlu0 %2110
  %v2113 = vmul.f32 %v1464, %v2036
  %v2114 = vmul.f32 %v1466, %v2041
  %v2115 = vmul.f32 %v1469, %v2046
  %v2116 = vmul.f32 %v1471, %v2051
  %v2117 = vmul.f32 %v1474, %v2056
  %v2118 = vmul.f32 %v1476, %v2061
  %v2119 = vmul.f32 %v1479, %v2066
  %v2120 = vmul.f32 %v1481, %v2071
  %v2121 = vmul.f32 %v1484, %v2076
  %v2122 = vmul.f32 %v1486, %v2081
  %v2123 = vmul.f32 %v1489, %v2086
  %v2124 = vmul.f32 %v1491, %v2091
  %v2125 = vmul.f32 %v1494, %v2096
  %v2126 = vmul.f32 %v1496, %v2101
  %v2127 = vmul.f32 %v1499, %v2106
  %v2128 = vmul.f32 %v1501, %v2111
  %2145 = vrot.lane.b32.xlu0 %v2113, 64
  %v2146 = vpop.permute.xlu0 %2145
  %2147 = vrot.lane.b32.xlu0 %v2114, 64
  %v2148 = vpop.permute.xlu0 %2147
  %2149 = vrot.lane.b32.xlu0 %v2115, 64
  %v2150 = vpop.permute.xlu0 %2149
  %2151 = vrot.lane.b32.xlu0 %v2116, 64
  %v2152 = vpop.permute.xlu0 %2151
  %2153 = vrot.lane.b32.xlu0 %v2117, 64
  %v2154 = vpop.permute.xlu0 %2153
  %2155 = vrot.lane.b32.xlu0 %v2118, 64
  %v2156 = vpop.permute.xlu0 %2155
  %2157 = vrot.lane.b32.xlu0 %v2119, 64
  %v2158 = vpop.permute.xlu0 %2157
  %2159 = vrot.lane.b32.xlu0 %v2120, 64
  %v2160 = vpop.permute.xlu0 %2159
  %2161 = vrot.lane.b32.xlu0 %v2121, 64
  %v2162 = vpop.permute.xlu0 %2161
  %2163 = vrot.lane.b32.xlu0 %v2122, 64
  %v2164 = vpop.permute.xlu0 %2163
  %2165 = vrot.lane.b32.xlu0 %v2123, 64
  %v2166 = vpop.permute.xlu0 %2165
  %2167 = vrot.lane.b32.xlu0 %v2124, 64
  %v2168 = vpop.permute.xlu0 %2167
  %2169 = vrot.lane.b32.xlu0 %v2125, 64
  %v2170 = vpop.permute.xlu0 %2169
  %2171 = vrot.lane.b32.xlu0 %v2126, 64
  %v2172 = vpop.permute.xlu0 %2171
  %2173 = vrot.lane.b32.xlu0 %v2127, 64
  %v2174 = vpop.permute.xlu0 %2173
  %2175 = vrot.lane.b32.xlu0 %v2128, 64
  %v2176 = vpop.permute.xlu0 %2175
  %v2193 = vrot.slane %v2146, 1
  %v2194 = vrot.slane %v2148, 1
  %v2195 = vrot.slane %v2150, 1
  %v2196 = vrot.slane %v2152, 1
  %v2197 = vrot.slane %v2154, 1
  %v2198 = vrot.slane %v2156, 1
  %v2199 = vrot.slane %v2158, 1
  %v2200 = vrot.slane %v2160, 1
  %v2201 = vrot.slane %v2162, 1
  %v2202 = vrot.slane %v2164, 1
  %v2203 = vrot.slane %v2166, 1
  %v2204 = vrot.slane %v2168, 1
  %v2205 = vrot.slane %v2170, 1
  %v2206 = vrot.slane %v2172, 1
  %v2207 = vrot.slane %v2174, 1
  %v2208 = vrot.slane %v2176, 1
  %v2209 = vsel %vm299, %v2207, %v2208
  %v2210 = vsel %vm299, %v2206, %v2207
  %v2211 = vsel %vm299, %v2205, %v2206
  %v2212 = vsel %vm299, %v2204, %v2205
  %v2213 = vsel %vm299, %v2203, %v2204
  %v2214 = vsel %vm299, %v2202, %v2203
  %v2215 = vsel %vm299, %v2201, %v2202
  %v2216 = vsel %vm299, %v2200, %v2201
  %v2217 = vsel %vm299, %v2199, %v2200
  %v2218 = vsel %vm299, %v2198, %v2199
  %v2219 = vsel %vm299, %v2197, %v2198
  %v2220 = vsel %vm299, %v2196, %v2197
  %v2221 = vsel %vm299, %v2195, %v2196
  %v2222 = vsel %vm299, %v2194, %v2195
  %v2223 = vsel %vm299, %v2193, %v2194
  %v2224 = vsel %vm299, %v2208, %v2193
  %v2225 = vadd.f32 %v2017, %v2224
  %v2226 = vadd.f32 %v2018, %v2223
  %v2227 = vadd.f32 %v2019, %v2222
  %v2228 = vadd.f32 %v2020, %v2221
  %v2229 = vadd.f32 %v2021, %v2220
  %v2230 = vadd.f32 %v2022, %v2219
  %v2231 = vadd.f32 %v2023, %v2218
  %v2232 = vadd.f32 %v2024, %v2217
  %v2233 = vadd.f32 %v2025, %v2216
  %v2234 = vadd.f32 %v2026, %v2215
  %v2235 = vadd.f32 %v2027, %v2214
  %v2236 = vadd.f32 %v2028, %v2213
  %v2237 = vadd.f32 %v2029, %v2212
  %v2238 = vadd.f32 %v2030, %v2211
  %v2239 = vadd.f32 %v2031, %v2210
  %v2240 = vadd.f32 %v2032, %v2209
  %v2241 = vmul.f32 %v1464, %v75
  %v2242 = vmul.f32 %v1466, %v80
  %v2243 = vmul.f32 %v1469, %v85
  %v2244 = vmul.f32 %v1471, %v90
  %v2245 = vmul.f32 %v1474, %v95
  %v2246 = vmul.f32 %v1476, %v100
  %v2247 = vmul.f32 %v1479, %v105
  %v2248 = vmul.f32 %v1481, %v110
  %v2249 = vmul.f32 %v1484, %v115
  %v2250 = vmul.f32 %v1486, %v120
  %v2251 = vmul.f32 %v1489, %v125
  %v2252 = vmul.f32 %v1491, %v130
  %v2253 = vmul.f32 %v1494, %v135
  %v2254 = vmul.f32 %v1496, %v140
  %v2255 = vmul.f32 %v1499, %v145
  %v2256 = vmul.f32 %v1501, %v150
  %2273 = vrot.lane.b32.xlu0 %v2241, 32
  %v2274 = vpop.permute.xlu0 %2273
  %2275 = vrot.lane.b32.xlu0 %v2242, 32
  %v2276 = vpop.permute.xlu0 %2275
  %2277 = vrot.lane.b32.xlu0 %v2243, 32
  %v2278 = vpop.permute.xlu0 %2277
  %2279 = vrot.lane.b32.xlu0 %v2244, 32
  %v2280 = vpop.permute.xlu0 %2279
  %2281 = vrot.lane.b32.xlu0 %v2245, 32
  %v2282 = vpop.permute.xlu0 %2281
  %2283 = vrot.lane.b32.xlu0 %v2246, 32
  %v2284 = vpop.permute.xlu0 %2283
  %2285 = vrot.lane.b32.xlu0 %v2247, 32
  %v2286 = vpop.permute.xlu0 %2285
  %2287 = vrot.lane.b32.xlu0 %v2248, 32
  %v2288 = vpop.permute.xlu0 %2287
  %2289 = vrot.lane.b32.xlu0 %v2249, 32
  %v2290 = vpop.permute.xlu0 %2289
  %2291 = vrot.lane.b32.xlu0 %v2250, 32
  %v2292 = vpop.permute.xlu0 %2291
  %2293 = vrot.lane.b32.xlu0 %v2251, 32
  %v2294 = vpop.permute.xlu0 %2293
  %2295 = vrot.lane.b32.xlu0 %v2252, 32
  %v2296 = vpop.permute.xlu0 %2295
  %2297 = vrot.lane.b32.xlu0 %v2253, 32
  %v2298 = vpop.permute.xlu0 %2297
  %2299 = vrot.lane.b32.xlu0 %v2254, 32
  %v2300 = vpop.permute.xlu0 %2299
  %2301 = vrot.lane.b32.xlu0 %v2255, 32
  %v2302 = vpop.permute.xlu0 %2301
  %2303 = vrot.lane.b32.xlu0 %v2256, 32
  %v2304 = vpop.permute.xlu0 %2303
  %v2321 = vrot.slane %v2274, 7
  %v2322 = vrot.slane %v2276, 7
  %v2323 = vrot.slane %v2278, 7
  %v2324 = vrot.slane %v2280, 7
  %v2325 = vrot.slane %v2282, 7
  %v2326 = vrot.slane %v2284, 7
  %v2327 = vrot.slane %v2286, 7
  %v2328 = vrot.slane %v2288, 7
  %v2329 = vrot.slane %v2290, 7
  %v2330 = vrot.slane %v2292, 7
  %v2331 = vrot.slane %v2294, 7
  %v2332 = vrot.slane %v2296, 7
  %v2333 = vrot.slane %v2298, 7
  %v2334 = vrot.slane %v2300, 7
  %v2335 = vrot.slane %v2302, 7
  %v2336 = vrot.slane %v2304, 7
  %v2337 = vsel %vm186, %v2335, %v2336
  %v2338 = vsel %vm186, %v2334, %v2335
  %v2339 = vsel %vm186, %v2333, %v2334
  %v2340 = vsel %vm186, %v2332, %v2333
  %v2341 = vsel %vm186, %v2331, %v2332
  %v2342 = vsel %vm186, %v2330, %v2331
  %v2343 = vsel %vm186, %v2329, %v2330
  %v2344 = vsel %vm186, %v2328, %v2329
  %v2345 = vsel %vm186, %v2327, %v2328
  %v2346 = vsel %vm186, %v2326, %v2327
  %v2347 = vsel %vm186, %v2325, %v2326
  %v2348 = vsel %vm186, %v2324, %v2325
  %v2349 = vsel %vm186, %v2323, %v2324
  %v2350 = vsel %vm186, %v2322, %v2323
  %v2351 = vsel %vm186, %v2321, %v2322
  %v2352 = vsel %vm186, %v2336, %v2321
  %v2353 = vadd.f32 %v2225, %v2352
  %v2354 = vadd.f32 %v2226, %v2351
  %v2355 = vadd.f32 %v2227, %v2350
  %v2356 = vadd.f32 %v2228, %v2349
  %v2357 = vadd.f32 %v2229, %v2348
  %v2358 = vadd.f32 %v2230, %v2347
  %v2359 = vadd.f32 %v2231, %v2346
  %v2360 = vadd.f32 %v2232, %v2345
  %v2361 = vadd.f32 %v2233, %v2344
  %v2362 = vadd.f32 %v2234, %v2343
  %v2363 = vadd.f32 %v2235, %v2342
  %v2364 = vadd.f32 %v2236, %v2341
  %v2365 = vadd.f32 %v2237, %v2340
  %v2366 = vadd.f32 %v2238, %v2339
  %v2367 = vadd.f32 %v2239, %v2338
  %v2368 = vadd.f32 %v2240, %v2337
  %v2369 = vmul.f32 %v1513, %v205
  %v2370 = vmul.f32 %v1515, %v209
  %v2371 = vmul.f32 %v1518, %v213
  %v2372 = vmul.f32 %v1520, %v217
  %v2373 = vmul.f32 %v1523, %v221
  %v2374 = vmul.f32 %v1525, %v225
  %v2375 = vmul.f32 %v1528, %v229
  %v2376 = vmul.f32 %v1530, %v233
  %v2377 = vmul.f32 %v1533, %v237
  %v2378 = vmul.f32 %v1535, %v241
  %v2379 = vmul.f32 %v1538, %v245
  %v2380 = vmul.f32 %v1540, %v249
  %v2381 = vmul.f32 %v1543, %v253
  %v2382 = vmul.f32 %v1545, %v257
  %v2383 = vmul.f32 %v1548, %v261
  %v2384 = vmul.f32 %v1550, %v265
  %2401 = vrot.lane.b32.xlu0 %v2369, 96
  %v2402 = vpop.permute.xlu0 %2401
  %2403 = vrot.lane.b32.xlu0 %v2370, 96
  %v2404 = vpop.permute.xlu0 %2403
  %2405 = vrot.lane.b32.xlu0 %v2371, 96
  %v2406 = vpop.permute.xlu0 %2405
  %2407 = vrot.lane.b32.xlu0 %v2372, 96
  %v2408 = vpop.permute.xlu0 %2407
  %2409 = vrot.lane.b32.xlu0 %v2373, 96
  %v2410 = vpop.permute.xlu0 %2409
  %2411 = vrot.lane.b32.xlu0 %v2374, 96
  %v2412 = vpop.permute.xlu0 %2411
  %2413 = vrot.lane.b32.xlu0 %v2375, 96
  %v2414 = vpop.permute.xlu0 %2413
  %2415 = vrot.lane.b32.xlu0 %v2376, 96
  %v2416 = vpop.permute.xlu0 %2415
  %2417 = vrot.lane.b32.xlu0 %v2377, 96
  %v2418 = vpop.permute.xlu0 %2417
  %2419 = vrot.lane.b32.xlu0 %v2378, 96
  %v2420 = vpop.permute.xlu0 %2419
  %2421 = vrot.lane.b32.xlu0 %v2379, 96
  %v2422 = vpop.permute.xlu0 %2421
  %2423 = vrot.lane.b32.xlu0 %v2380, 96
  %v2424 = vpop.permute.xlu0 %2423
  %2425 = vrot.lane.b32.xlu0 %v2381, 96
  %v2426 = vpop.permute.xlu0 %2425
  %2427 = vrot.lane.b32.xlu0 %v2382, 96
  %v2428 = vpop.permute.xlu0 %2427
  %2429 = vrot.lane.b32.xlu0 %v2383, 96
  %v2430 = vpop.permute.xlu0 %2429
  %2431 = vrot.lane.b32.xlu0 %v2384, 96
  %v2432 = vpop.permute.xlu0 %2431
  %v2449 = vrot.slane %v2402, 1
  %v2450 = vrot.slane %v2404, 1
  %v2451 = vrot.slane %v2406, 1
  %v2452 = vrot.slane %v2408, 1
  %v2453 = vrot.slane %v2410, 1
  %v2454 = vrot.slane %v2412, 1
  %v2455 = vrot.slane %v2414, 1
  %v2456 = vrot.slane %v2416, 1
  %v2457 = vrot.slane %v2418, 1
  %v2458 = vrot.slane %v2420, 1
  %v2459 = vrot.slane %v2422, 1
  %v2460 = vrot.slane %v2424, 1
  %v2461 = vrot.slane %v2426, 1
  %v2462 = vrot.slane %v2428, 1
  %v2463 = vrot.slane %v2430, 1
  %v2464 = vrot.slane %v2432, 1
  %v2465 = vsel %vm299, %v2463, %v2464
  %v2466 = vsel %vm299, %v2462, %v2463
  %v2467 = vsel %vm299, %v2461, %v2462
  %v2468 = vsel %vm299, %v2460, %v2461
  %v2469 = vsel %vm299, %v2459, %v2460
  %v2470 = vsel %vm299, %v2458, %v2459
  %v2471 = vsel %vm299, %v2457, %v2458
  %v2472 = vsel %vm299, %v2456, %v2457
  %v2473 = vsel %vm299, %v2455, %v2456
  %v2474 = vsel %vm299, %v2454, %v2455
  %v2475 = vsel %vm299, %v2453, %v2454
  %v2476 = vsel %vm299, %v2452, %v2453
  %v2477 = vsel %vm299, %v2451, %v2452
  %v2478 = vsel %vm299, %v2450, %v2451
  %v2479 = vsel %vm299, %v2449, %v2450
  %v2480 = vsel %vm299, %v2464, %v2449
  %v2481 = vadd.f32 %v2353, %v2479
  %v2482 = vadd.f32 %v2354, %v2478
  %v2483 = vadd.f32 %v2355, %v2477
  %v2484 = vadd.f32 %v2356, %v2476
  %v2485 = vadd.f32 %v2357, %v2475
  %v2486 = vadd.f32 %v2358, %v2474
  %v2487 = vadd.f32 %v2359, %v2473
  %v2488 = vadd.f32 %v2360, %v2472
  %v2489 = vadd.f32 %v2361, %v2471
  %v2490 = vadd.f32 %v2362, %v2470
  %v2491 = vadd.f32 %v2363, %v2469
  %v2492 = vadd.f32 %v2364, %v2468
  %v2493 = vadd.f32 %v2365, %v2467
  %v2494 = vadd.f32 %v2366, %v2466
  %v2495 = vadd.f32 %v2367, %v2465
  %v2496 = vadd.f32 %v2368, %v2480
  %2498 = vset.pattern.permute.xlu0 3
  %2499 = vperm.xlu0 %2498, %v1777
  %v2500 = vpop.permute.xlu0 %2499
  %2503 = vset.pattern.permute.xlu0 3
  %2504 = vperm.xlu0 %2503, %v1778
  %v2505 = vpop.permute.xlu0 %2504
  %2508 = vset.pattern.permute.xlu0 3
  %2509 = vperm.xlu0 %2508, %v1779
  %v2510 = vpop.permute.xlu0 %2509
  %2513 = vset.pattern.permute.xlu0 3
  %2514 = vperm.xlu0 %2513, %v1780
  %v2515 = vpop.permute.xlu0 %2514
  %2518 = vset.pattern.permute.xlu0 3
  %2519 = vperm.xlu0 %2518, %v1781
  %v2520 = vpop.permute.xlu0 %2519
  %2523 = vset.pattern.permute.xlu0 3
  %2524 = vperm.xlu0 %2523, %v1782
  %v2525 = vpop.permute.xlu0 %2524
  %2528 = vset.pattern.permute.xlu0 3
  %2529 = vperm.xlu0 %2528, %v1783
  %v2530 = vpop.permute.xlu0 %2529
  %2533 = vset.pattern.permute.xlu0 3
  %2534 = vperm.xlu0 %2533, %v1784
  %v2535 = vpop.permute.xlu0 %2534
  %2538 = vset.pattern.permute.xlu0 3
  %2539 = vperm.xlu0 %2538, %v1785
  %v2540 = vpop.permute.xlu0 %2539
  %2543 = vset.pattern.permute.xlu0 3
  %2544 = vperm.xlu0 %2543, %v1786
  %v2545 = vpop.permute.xlu0 %2544
  %2548 = vset.pattern.permute.xlu0 3
  %2549 = vperm.xlu0 %2548, %v1787
  %v2550 = vpop.permute.xlu0 %2549
  %2553 = vset.pattern.permute.xlu0 3
  %2554 = vperm.xlu0 %2553, %v1788
  %v2555 = vpop.permute.xlu0 %2554
  %2558 = vset.pattern.permute.xlu0 3
  %2559 = vperm.xlu0 %2558, %v1789
  %v2560 = vpop.permute.xlu0 %2559
  %2563 = vset.pattern.permute.xlu0 3
  %2564 = vperm.xlu0 %2563, %v1790
  %v2565 = vpop.permute.xlu0 %2564
  %2568 = vset.pattern.permute.xlu0 3
  %2569 = vperm.xlu0 %2568, %v1791
  %v2570 = vpop.permute.xlu0 %2569
  %2573 = vset.pattern.permute.xlu0 3
  %2574 = vperm.xlu0 %2573, %v1792
  %v2575 = vpop.permute.xlu0 %2574
  %v2577 = vmul.f32 %v1513, %v2500
  %v2578 = vmul.f32 %v1515, %v2505
  %v2579 = vmul.f32 %v1518, %v2510
  %v2580 = vmul.f32 %v1520, %v2515
  %v2581 = vmul.f32 %v1523, %v2520
  %v2582 = vmul.f32 %v1525, %v2525
  %v2583 = vmul.f32 %v1528, %v2530
  %v2584 = vmul.f32 %v1530, %v2535
  %v2585 = vmul.f32 %v1533, %v2540
  %v2586 = vmul.f32 %v1535, %v2545
  %v2587 = vmul.f32 %v1538, %v2550
  %v2588 = vmul.f32 %v1540, %v2555
  %v2589 = vmul.f32 %v1543, %v2560
  %v2590 = vmul.f32 %v1545, %v2565
  %v2591 = vmul.f32 %v1548, %v2570
  %v2592 = vmul.f32 %v1550, %v2575
  %2609 = vrot.lane.b32.xlu0 %v2577, 64
  %v2610 = vpop.permute.xlu0 %2609
  %2611 = vrot.lane.b32.xlu0 %v2578, 64
  %v2612 = vpop.permute.xlu0 %2611
  %2613 = vrot.lane.b32.xlu0 %v2579, 64
  %v2614 = vpop.permute.xlu0 %2613
  %2615 = vrot.lane.b32.xlu0 %v2580, 64
  %v2616 = vpop.permute.xlu0 %2615
  %2617 = vrot.lane.b32.xlu0 %v2581, 64
  %v2618 = vpop.permute.xlu0 %2617
  %2619 = vrot.lane.b32.xlu0 %v2582, 64
  %v2620 = vpop.permute.xlu0 %2619
  %2621 = vrot.lane.b32.xlu0 %v2583, 64
  %v2622 = vpop.permute.xlu0 %2621
  %2623 = vrot.lane.b32.xlu0 %v2584, 64
  %v2624 = vpop.permute.xlu0 %2623
  %2625 = vrot.lane.b32.xlu0 %v2585, 64
  %v2626 = vpop.permute.xlu0 %2625
  %2627 = vrot.lane.b32.xlu0 %v2586, 64
  %v2628 = vpop.permute.xlu0 %2627
  %2629 = vrot.lane.b32.xlu0 %v2587, 64
  %v2630 = vpop.permute.xlu0 %2629
  %2631 = vrot.lane.b32.xlu0 %v2588, 64
  %v2632 = vpop.permute.xlu0 %2631
  %2633 = vrot.lane.b32.xlu0 %v2589, 64
  %v2634 = vpop.permute.xlu0 %2633
  %2635 = vrot.lane.b32.xlu0 %v2590, 64
  %v2636 = vpop.permute.xlu0 %2635
  %2637 = vrot.lane.b32.xlu0 %v2591, 64
  %v2638 = vpop.permute.xlu0 %2637
  %2639 = vrot.lane.b32.xlu0 %v2592, 64
  %v2640 = vpop.permute.xlu0 %2639
  %v2657 = vrot.slane %v2610, 7
  %v2658 = vrot.slane %v2612, 7
  %v2659 = vrot.slane %v2614, 7
  %v2660 = vrot.slane %v2616, 7
  %v2661 = vrot.slane %v2618, 7
  %v2662 = vrot.slane %v2620, 7
  %v2663 = vrot.slane %v2622, 7
  %v2664 = vrot.slane %v2624, 7
  %v2665 = vrot.slane %v2626, 7
  %v2666 = vrot.slane %v2628, 7
  %v2667 = vrot.slane %v2630, 7
  %v2668 = vrot.slane %v2632, 7
  %v2669 = vrot.slane %v2634, 7
  %v2670 = vrot.slane %v2636, 7
  %v2671 = vrot.slane %v2638, 7
  %v2672 = vrot.slane %v2640, 7
  %v2673 = vsel %vm186, %v2671, %v2672
  %v2674 = vsel %vm186, %v2670, %v2671
  %v2675 = vsel %vm186, %v2669, %v2670
  %v2676 = vsel %vm186, %v2668, %v2669
  %v2677 = vsel %vm186, %v2667, %v2668
  %v2678 = vsel %vm186, %v2666, %v2667
  %v2679 = vsel %vm186, %v2665, %v2666
  %v2680 = vsel %vm186, %v2664, %v2665
  %v2681 = vsel %vm186, %v2663, %v2664
  %v2682 = vsel %vm186, %v2662, %v2663
  %v2683 = vsel %vm186, %v2661, %v2662
  %v2684 = vsel %vm186, %v2660, %v2661
  %v2685 = vsel %vm186, %v2659, %v2660
  %v2686 = vsel %vm186, %v2658, %v2659
  %v2687 = vsel %vm186, %v2657, %v2658
  %v2688 = vsel %vm186, %v2672, %v2657
  %v2689 = vadd.f32 %v2481, %v2687
  %v2690 = vadd.f32 %v2482, %v2686
  %v2691 = vadd.f32 %v2483, %v2685
  %v2692 = vadd.f32 %v2484, %v2684
  %v2693 = vadd.f32 %v2485, %v2683
  %v2694 = vadd.f32 %v2486, %v2682
  %v2695 = vadd.f32 %v2487, %v2681
  %v2696 = vadd.f32 %v2488, %v2680
  %v2697 = vadd.f32 %v2489, %v2679
  %v2698 = vadd.f32 %v2490, %v2678
  %v2699 = vadd.f32 %v2491, %v2677
  %v2700 = vadd.f32 %v2492, %v2676
  %v2701 = vadd.f32 %v2493, %v2675
  %v2702 = vadd.f32 %v2494, %v2674
  %v2703 = vadd.f32 %v2495, %v2673
  %v2704 = vadd.f32 %v2496, %v2688
  %v2705 = vmul.f32 %v1513, %v560
  %v2706 = vmul.f32 %v1515, %v564
  %v2707 = vmul.f32 %v1518, %v568
  %v2708 = vmul.f32 %v1520, %v572
  %v2709 = vmul.f32 %v1523, %v576
  %v2710 = vmul.f32 %v1525, %v580
  %v2711 = vmul.f32 %v1528, %v584
  %v2712 = vmul.f32 %v1530, %v588
  %v2713 = vmul.f32 %v1533, %v592
  %v2714 = vmul.f32 %v1535, %v596
  %v2715 = vmul.f32 %v1538, %v600
  %v2716 = vmul.f32 %v1540, %v604
  %v2717 = vmul.f32 %v1543, %v608
  %v2718 = vmul.f32 %v1545, %v612
  %v2719 = vmul.f32 %v1548, %v616
  %v2720 = vmul.f32 %v1550, %v620
  %2737 = vrot.lane.b32.xlu0 %v2705, 32
  %v2738 = vpop.permute.xlu0 %2737
  %2739 = vrot.lane.b32.xlu0 %v2706, 32
  %v2740 = vpop.permute.xlu0 %2739
  %2741 = vrot.lane.b32.xlu0 %v2707, 32
  %v2742 = vpop.permute.xlu0 %2741
  %2743 = vrot.lane.b32.xlu0 %v2708, 32
  %v2744 = vpop.permute.xlu0 %2743
  %2745 = vrot.lane.b32.xlu0 %v2709, 32
  %v2746 = vpop.permute.xlu0 %2745
  %2747 = vrot.lane.b32.xlu0 %v2710, 32
  %v2748 = vpop.permute.xlu0 %2747
  %2749 = vrot.lane.b32.xlu0 %v2711, 32
  %v2750 = vpop.permute.xlu0 %2749
  %2751 = vrot.lane.b32.xlu0 %v2712, 32
  %v2752 = vpop.permute.xlu0 %2751
  %2753 = vrot.lane.b32.xlu0 %v2713, 32
  %v2754 = vpop.permute.xlu0 %2753
  %2755 = vrot.lane.b32.xlu0 %v2714, 32
  %v2756 = vpop.permute.xlu0 %2755
  %2757 = vrot.lane.b32.xlu0 %v2715, 32
  %v2758 = vpop.permute.xlu0 %2757
  %2759 = vrot.lane.b32.xlu0 %v2716, 32
  %v2760 = vpop.permute.xlu0 %2759
  %2761 = vrot.lane.b32.xlu0 %v2717, 32
  %v2762 = vpop.permute.xlu0 %2761
  %2763 = vrot.lane.b32.xlu0 %v2718, 32
  %v2764 = vpop.permute.xlu0 %2763
  %2765 = vrot.lane.b32.xlu0 %v2719, 32
  %v2766 = vpop.permute.xlu0 %2765
  %2767 = vrot.lane.b32.xlu0 %v2720, 32
  %v2768 = vpop.permute.xlu0 %2767
  %v2785 = vadd.f32 %v2689, %v2740
  %v2786 = vadd.f32 %v2690, %v2742
  %v2787 = vadd.f32 %v2691, %v2744
  %v2788 = vadd.f32 %v2692, %v2746
  %v2789 = vadd.f32 %v2693, %v2748
  %v2790 = vadd.f32 %v2694, %v2750
  %v2791 = vadd.f32 %v2695, %v2752
  %v2792 = vadd.f32 %v2696, %v2754
  %v2793 = vadd.f32 %v2697, %v2756
  %v2794 = vadd.f32 %v2698, %v2758
  %v2795 = vadd.f32 %v2699, %v2760
  %v2796 = vadd.f32 %v2700, %v2762
  %v2797 = vadd.f32 %v2701, %v2764
  %v2798 = vadd.f32 %v2702, %v2766
  %v2799 = vadd.f32 %v2703, %v2768
  %v2800 = vadd.f32 %v2704, %v2738
  %2801 = vset.pattern.permute.xlu0 3
  %2802 = vperm.xlu0 %2801, %v1649
  %v2803 = vpop.permute.xlu0 %2802
  %2805 = vset.pattern.permute.xlu0 3
  %2806 = vperm.xlu0 %2805, %v1650
  %v2807 = vpop.permute.xlu0 %2806
  %2809 = vset.pattern.permute.xlu0 3
  %2810 = vperm.xlu0 %2809, %v1651
  %v2811 = vpop.permute.xlu0 %2810
  %2813 = vset.pattern.permute.xlu0 3
  %2814 = vperm.xlu0 %2813, %v1652
  %v2815 = vpop.permute.xlu0 %2814
  %2817 = vset.pattern.permute.xlu0 3
  %2818 = vperm.xlu0 %2817, %v1653
  %v2819 = vpop.permute.xlu0 %2818
  %2821 = vset.pattern.permute.xlu0 3
  %2822 = vperm.xlu0 %2821, %v1654
  %v2823 = vpop.permute.xlu0 %2822
  %2825 = vset.pattern.permute.xlu0 3
  %2826 = vperm.xlu0 %2825, %v1655
  %v2827 = vpop.permute.xlu0 %2826
  %2829 = vset.pattern.permute.xlu0 3
  %2830 = vperm.xlu0 %2829, %v1656
  %v2831 = vpop.permute.xlu0 %2830
  %2833 = vset.pattern.permute.xlu0 3
  %2834 = vperm.xlu0 %2833, %v1657
  %v2835 = vpop.permute.xlu0 %2834
  %2837 = vset.pattern.permute.xlu0 3
  %2838 = vperm.xlu0 %2837, %v1658
  %v2839 = vpop.permute.xlu0 %2838
  %2841 = vset.pattern.permute.xlu0 3
  %2842 = vperm.xlu0 %2841, %v1659
  %v2843 = vpop.permute.xlu0 %2842
  %2845 = vset.pattern.permute.xlu0 3
  %2846 = vperm.xlu0 %2845, %v1660
  %v2847 = vpop.permute.xlu0 %2846
  %2849 = vset.pattern.permute.xlu0 3
  %2850 = vperm.xlu0 %2849, %v1661
  %v2851 = vpop.permute.xlu0 %2850
  %2853 = vset.pattern.permute.xlu0 3
  %2854 = vperm.xlu0 %2853, %v1662
  %v2855 = vpop.permute.xlu0 %2854
  %2857 = vset.pattern.permute.xlu0 3
  %2858 = vperm.xlu0 %2857, %v1663
  %v2859 = vpop.permute.xlu0 %2858
  %2861 = vset.pattern.permute.xlu0 3
  %2862 = vperm.xlu0 %2861, %v1664
  %v2863 = vpop.permute.xlu0 %2862
  %v2865 = vmul.f32 %v1562, %v2803
  %v2866 = vmul.f32 %v1564, %v2807
  %v2867 = vmul.f32 %v1567, %v2811
  %v2868 = vmul.f32 %v1569, %v2815
  %v2869 = vmul.f32 %v1572, %v2819
  %v2870 = vmul.f32 %v1574, %v2823
  %v2871 = vmul.f32 %v1577, %v2827
  %v2872 = vmul.f32 %v1579, %v2831
  %v2873 = vmul.f32 %v1582, %v2835
  %v2874 = vmul.f32 %v1584, %v2839
  %v2875 = vmul.f32 %v1587, %v2843
  %v2876 = vmul.f32 %v1589, %v2847
  %v2877 = vmul.f32 %v1592, %v2851
  %v2878 = vmul.f32 %v1594, %v2855
  %v2879 = vmul.f32 %v1597, %v2859
  %v2880 = vmul.f32 %v1599, %v2863
  %v2881 = vrot.slane %v2865, 1
  %v2882 = vrot.slane %v2866, 1
  %v2883 = vrot.slane %v2867, 1
  %v2884 = vrot.slane %v2868, 1
  %v2885 = vrot.slane %v2869, 1
  %v2886 = vrot.slane %v2870, 1
  %v2887 = vrot.slane %v2871, 1
  %v2888 = vrot.slane %v2872, 1
  %v2889 = vrot.slane %v2873, 1
  %v2890 = vrot.slane %v2874, 1
  %v2891 = vrot.slane %v2875, 1
  %v2892 = vrot.slane %v2876, 1
  %v2893 = vrot.slane %v2877, 1
  %v2894 = vrot.slane %v2878, 1
  %v2895 = vrot.slane %v2879, 1
  %v2896 = vrot.slane %v2880, 1
  %v2897 = vsel %vm299, %v2895, %v2896
  %v2898 = vsel %vm299, %v2894, %v2895
  %v2899 = vsel %vm299, %v2893, %v2894
  %v2900 = vsel %vm299, %v2892, %v2893
  %v2901 = vsel %vm299, %v2891, %v2892
  %v2902 = vsel %vm299, %v2890, %v2891
  %v2903 = vsel %vm299, %v2889, %v2890
  %v2904 = vsel %vm299, %v2888, %v2889
  %v2905 = vsel %vm299, %v2887, %v2888
  %v2906 = vsel %vm299, %v2886, %v2887
  %v2907 = vsel %vm299, %v2885, %v2886
  %v2908 = vsel %vm299, %v2884, %v2885
  %v2909 = vsel %vm299, %v2883, %v2884
  %v2910 = vsel %vm299, %v2882, %v2883
  %v2911 = vsel %vm299, %v2881, %v2882
  %v2912 = vsel %vm299, %v2896, %v2881
  %v2913 = vadd.f32 %v2785, %v2910
  %v2914 = vadd.f32 %v2786, %v2909
  %v2915 = vadd.f32 %v2787, %v2908
  %v2916 = vadd.f32 %v2788, %v2907
  %v2917 = vadd.f32 %v2789, %v2906
  %v2918 = vadd.f32 %v2790, %v2905
  %v2919 = vadd.f32 %v2791, %v2904
  %v2920 = vadd.f32 %v2792, %v2903
  %v2921 = vadd.f32 %v2793, %v2902
  %v2922 = vadd.f32 %v2794, %v2901
  %v2923 = vadd.f32 %v2795, %v2900
  %v2924 = vadd.f32 %v2796, %v2899
  %v2925 = vadd.f32 %v2797, %v2898
  %v2926 = vadd.f32 %v2798, %v2897
  %v2927 = vadd.f32 %v2799, %v2912
  %v2928 = vadd.f32 %v2800, %v2911
  %v2929 = vld [vmem:[%s5] sm:$0x1]
  %v2931 = vperm.slane %v2929, 0
  %v2933 = vadd.f32 %v2913, %v2931
  %v2934 = vadd.f32 %v2914, %v2931
  %v2935 = vadd.f32 %v2915, %v2931
  %v2936 = vadd.f32 %v2916, %v2931
  %v2937 = vadd.f32 %v2917, %v2931
  %v2938 = vadd.f32 %v2918, %v2931
  %v2939 = vadd.f32 %v2919, %v2931
  %v2940 = vadd.f32 %v2920, %v2931
  %v2941 = vadd.f32 %v2921, %v2931
  %v2942 = vadd.f32 %v2922, %v2931
  %v2943 = vadd.f32 %v2923, %v2931
  %v2944 = vadd.f32 %v2924, %v2931
  %v2945 = vadd.f32 %v2925, %v2931
  %v2946 = vadd.f32 %v2926, %v2931
  %v2947 = vadd.f32 %v2927, %v2931
  %v2948 = vadd.f32 %v2928, %v2931
  %2949 = vst.msk [vmem:[%s6] sm:$0xff] %vm444, %v2933
  %2950 = vst.msk [vmem:[%s6 + $0x8] sm:$0xff] %vm444, %v2934
  %2951 = vst.msk [vmem:[%s6 + $0x10] sm:$0xff] %vm444, %v2935
  %2952 = vst.msk [vmem:[%s6 + $0x18] sm:$0xff] %vm444, %v2936
  %2953 = vst.msk [vmem:[%s6 + $0x20] sm:$0xff] %vm444, %v2937
  %2954 = vst.msk [vmem:[%s6 + $0x28] sm:$0xff] %vm444, %v2938
  %2955 = vst.msk [vmem:[%s6 + $0x30] sm:$0xff] %vm444, %v2939
  %2956 = vst.msk [vmem:[%s6 + $0x38] sm:$0xff] %vm444, %v2940
  %2957 = vst.msk [vmem:[%s6 + $0x40] sm:$0xff] %vm444, %v2941
  %2958 = vst.msk [vmem:[%s6 + $0x48] sm:$0xff] %vm444, %v2942
  %2959 = vst.msk [vmem:[%s6 + $0x50] sm:$0xff] %vm444, %v2943
  %2960 = vst.msk [vmem:[%s6 + $0x58] sm:$0xff] %vm444, %v2944
  %2961 = vst.msk [vmem:[%s6 + $0x60] sm:$0xff] %vm444, %v2945
  %2962 = vst.msk [vmem:[%s6 + $0x68] sm:$0xff] %vm444, %v2946
  %2963 = vst.msk [vmem:[%s6 + $0x70] sm:$0xff] %vm444, %v2947
  %2964 = vst.msk [vmem:[%s6 + $0x78] sm:$0xff] %vm444, %v2948
  // Predicated region
  $region26: #{tpu_custom_call.1} parent=0 // pred_check
    _
  $region27: #{tpu_custom_call.1} parent=0 // pred_check_branch
    %2966 = sbr.rel (0) target = $region29
  $region28: #{tpu_custom_call.1} parent=0 // pred_region
    _
  $region29: #{tpu_custom_call.1} parent=0 // pred_fallthru
    _
  // Predicated region
  $region30: #{tpu_custom_call.1} parent=0 // pred_check
    _
  $region31: #{tpu_custom_call.1} parent=0 // pred_check_branch
    %2968 = sbr.rel (0) target = $region33
  $region32: #{tpu_custom_call.1} parent=0 // pred_region
    _
  $region33: #{tpu_custom_call.1} parent=0 // pred_fallthru
    _

</llo_original>
